<compile_context>
chip_gen: v7x
topology: tpu7x:2x2x1
jax: 0.10.0
libtpu: 0.0.40
codegen_flags: <defaults>
</compile_context>

<pallas_src>
import math
import functools

import numpy as np
import jax
import jax.numpy as jnp
from jax import lax
from jax.experimental import pallas as pl
from jax.experimental.pallas import tpu as pltpu


# ---------------------------------------------------------------------------
# Rotary helpers (match get_rotary_matrix exactly, including the (i-1) quirk)
# ---------------------------------------------------------------------------
def get_rotary_matrix_np(context_window, embedding_dim):
    R = np.zeros((context_window, embedding_dim, embedding_dim), dtype=np.float32)
    for position in range(context_window):
        for i in range(embedding_dim // 2):
            theta = 10000.0 ** (-2.0 * (i - 1) / embedding_dim)
            m_theta = position * theta
            R[position, 2 * i, 2 * i] = np.cos(m_theta)
            R[position, 2 * i, 2 * i + 1] = -np.sin(m_theta)
            R[position, 2 * i + 1, 2 * i] = np.sin(m_theta)
            R[position, 2 * i + 1, 2 * i + 1] = np.cos(m_theta)
    return R


def rope_cos_sin(context_window, embedding_dim):
    # q_rot = q * COS + pair_swap(q) * SIN   (per position), signs baked into SIN
    cos = np.zeros((context_window, embedding_dim), dtype=np.float64)
    sin = np.zeros((context_window, embedding_dim), dtype=np.float64)
    for position in range(context_window):
        for i in range(embedding_dim // 2):
            theta = 10000.0 ** (-2.0 * (i - 1) / embedding_dim)
            m_theta = position * theta
            c, s = np.cos(m_theta), np.sin(m_theta)
            cos[position, 2 * i] = c
            cos[position, 2 * i + 1] = c
            sin[position, 2 * i] = s
            sin[position, 2 * i + 1] = -s
    return cos.astype(np.float32), sin.astype(np.float32)


def pair_swap_matrix(embedding_dim):
    P = np.zeros((embedding_dim, embedding_dim), dtype=np.float32)
    for i in range(embedding_dim // 2):
        P[2 * i, 2 * i + 1] = 1.0
        P[2 * i + 1, 2 * i] = 1.0
    return P


# ---------------------------------------------------------------------------
# Pallas kernel: one LlamaBlock forward for ONE batch element per grid step
# ---------------------------------------------------------------------------
def llama_block_kernel(x_ref, scale_ref, cos_ref, sin_ref,
                       wbig_ref, wot_ref, bo_ref,
                       w1t_ref, b1_ref, wglt_ref, bgl_ref,
                       beta_ref, o_ref, *, M, D, H):
    f32 = jnp.float32
    bf16 = jnp.bfloat16
    HD = H * D
    rms_mul = math.sqrt(M * D)           # 1/ff_rms = rsqrt(sum(x^2)) * sqrt(M*D)

    scale = scale_ref[...]               # (M, D)

    def rmsnorm(t):                      # t: (M, D) f32, whole-sequence statistic
        ss = jnp.sum(t * t, keepdims=True)              # (1, 1)
        inv = lax.rsqrt(ss) * rms_mul                   # == 1 / ff_rms
        return scale * (t * inv)

    x = x_ref[0]                                         # (M, D) f32
    x1 = rmsnorm(x)                                      # first RMSNorm

    # Fused QKV + pre-swapped q/k for RoPE; 1/sqrt(D) already folded into Wq.
    qkv = jnp.dot(x1.astype(bf16), wbig_ref[...],
                  preferred_element_type=f32)            # (M, 5*H*D)
    q = qkv[:, 0 * HD:1 * HD]
    qs = qkv[:, 1 * HD:2 * HD]
    k = qkv[:, 2 * HD:3 * HD]
    ks = qkv[:, 3 * HD:4 * HD]
    v = qkv[:, 4 * HD:5 * HD]

    cos = cos_ref[...]                                   # (M, H*D)
    sin = sin_ref[...]
    qr = q * cos + qs * sin                              # RoPE (scaled q)
    kr = k * cos + ks * sin

    row = lax.broadcasted_iota(jnp.int32, (M, M), 0)
    col = lax.broadcasted_iota(jnp.int32, (M, M), 1)
    causal = row >= col

    heads = []
    for h in range(H):
        sl = slice(h * D, (h + 1) * D)
        s = lax.dot_general(qr[:, sl], kr[:, sl], (((1,), (1,)), ((), ())),
                            preferred_element_type=f32)  # (M, M), already /sqrt(D)
        s = jnp.where(causal, s, jnp.float32(-1e30))
        p = jnp.exp(s - jnp.max(s, axis=-1, keepdims=True))
        p = p * pl.reciprocal(jnp.sum(p, axis=-1, keepdims=True), approx=True)
        heads.append(jnp.dot(p, v[:, sl], preferred_element_type=f32))
    head_cat = jnp.concatenate(heads, axis=1)            # (M, H*D)

    attn = jnp.dot(head_cat.astype(bf16), wot_ref[...],
                   preferred_element_type=f32) + bo_ref[...]
    # TODO(synk): SDPA dropout_p=0.1 and nn.Dropout(0.1) are training-mode RNG ops;
    #             treated as identity here (eval semantics).
    x2 = x1 + attn

    # --- second RMSNorm + feedforward (Linear -> SwiGLU) -------------------
    x3 = rmsnorm(x2)
    h1 = jnp.dot(x3.astype(bf16), w1t_ref[...],
                 preferred_element_type=f32) + b1_ref[...]
    gl = jnp.dot(h1.astype(bf16), wglt_ref[...],
                 preferred_element_type=f32) + bgl_ref[...]   # (M, 2D): [gate | lin]
    g, lin = gl[:, 0:D], gl[:, D:2 * D]
    beta = beta_ref[0, 0]
    swish_gate = g * jax.nn.sigmoid(beta * g)
    o_ref[0] = (x3 + swish_gate * lin).astype(o_ref.dtype)


# ---------------------------------------------------------------------------
# Wrapper: host-side weight fusion + pallas_call with a batch grid
# ---------------------------------------------------------------------------
def llama_block_pallas(x, params, cos_full, sin_full, P):
    B, M, D = x.shape
    H = params['wq'].shape[0]
    HD = H * D
    inv_sqrt_d = 1.0 / math.sqrt(D)
    f32, bf16 = jnp.float32, jnp.bfloat16

    def flatten_heads(w3):               # (H, Din, Dout) -> (Din, H*Dout)
        return jnp.transpose(w3, (1, 0, 2)).reshape(D, HD)

    # Per-head W^T, with the attention 1/sqrt(D) folded into Wq (and its swapped copy).
    wq_t = jnp.transpose(params['wq'], (0, 2, 1)) * inv_sqrt_d
    wk_t = jnp.transpose(params['wk'], (0, 2, 1))
    wv_t = jnp.transpose(params['wv'], (0, 2, 1))
    # Pre-swapped copies: swap(q) = q @ P = x1 @ (Wq^T @ P)  -> no runtime permutation.
    wqs_t = jnp.einsum('hde,ef->hdf', wq_t, P)
    wks_t = jnp.einsum('hde,ef->hdf', wk_t, P)
    wbig = jnp.concatenate(
        [flatten_heads(w) for w in (wq_t, wqs_t, wk_t, wks_t, wv_t)],
        axis=1).astype(bf16)                              # (D, 5*H*D)

    wot = params['wo'].T.astype(bf16)                     # (H*D, D)
    bo = params['bo'].reshape(1, D).astype(f32)
    w1t = params['w1'].T.astype(bf16)                     # (D, D)
    b1 = params['b1'].reshape(1, D).astype(f32)
    wglt = jnp.concatenate([params['wg'].T, params['wl'].T], axis=1).astype(bf16)  # (D, 2D)
    bgl = jnp.concatenate([params['bg'], params['bl']]).reshape(1, 2 * D).astype(f32)
    beta = params['beta'].reshape(1, 1).astype(f32)

    scale = params['scale'][:M, :].astype(f32)            # (M, D) -- no batch tiling
    cosH = jnp.tile(cos_full[:M, :], (1, H)).astype(f32)  # (M, H*D)
    sinH = jnp.tile(sin_full[:M, :], (1, H)).astype(f32)

    def const_spec(shape):
        return pl.BlockSpec(shape, lambda b: (0,) * len(shape))

    in_specs = [
        pl.BlockSpec((1, M, D), lambda b: (b, 0, 0)),     # x        (pipelined over B)
        const_spec((M, D)),                               # scale
        const_spec((M, HD)),                              # cos
        const_spec((M, HD)),                              # sin
        const_spec((D, 5 * HD)),                          # fused QKV(+swap) weights
        const_spec((HD, D)),                              # Wo^T
        const_spec((1, D)),                               # bo
        const_spec((D, D)),                               # W1^T
        const_spec((1, D)),                               # b1
        const_spec((D, 2 * D)),                           # [Wg^T | Wl^T]
        const_spec((1, 2 * D)),                           # [bg | bl]
        pl.BlockSpec((1, 1), lambda b: (0, 0),
                     memory_space=pltpu.MemorySpace.SMEM),  # beta (scalar path)
    ]
    out_spec = pl.BlockSpec((1, M, D), lambda b: (b, 0, 0))

    # Explicit VMEM budget: resident block bytes * generous headroom for
    # double-buffering and intermediates (portable to v7x's 64 MiB).
    resident_bytes = (
        2 * (M * D * 4)                       # x block + out block (f32)
        + (M * D * 4) + 2 * (M * HD * 4)      # scale, cos, sin
        + (D * 5 * HD * 2)                    # fused QKV weights (bf16)
        + (HD * D * 2) + (D * 4)              # Wo^T, bo
        + (D * D * 2) + (D * 4)               # W1^T, b1
        + (D * 2 * D * 2) + (2 * D * 4)       # fused gate/lin, biases
    )
    vmem_limit = int(min(96 * 2 ** 20, max(4 * 2 ** 20, 16 * resident_bytes)))

    kernel = functools.partial(llama_block_kernel, M=M, D=D, H=H)
    out = pl.pallas_call(
        kernel,
        out_shape=jax.ShapeDtypeStruct((B, M, D), jnp.float32),
        grid=(B,),
        in_specs=in_specs,
        out_specs=out_spec,
        compiler_params=pltpu.CompilerParams(
            dimension_semantics=("parallel",),
            vmem_limit_bytes=vmem_limit),
    )(x.astype(f32), scale, cosH, sinH, wbig, wot, bo, w1t, b1, wglt, bgl, beta)
    return out


# ---------------------------------------------------------------------------
# Pure-JAX reference (mirrors the PyTorch code, uses the explicit R matrices)
# ---------------------------------------------------------------------------
def llama_block_reference(x, params, R):
    B, M, D = x.shape
    H = params['wq'].shape[0]

    def rms(t):
        ff = jnp.sqrt(jnp.sum(t * t, axis=(1, 2))) * (M * D) ** (-0.5)
        return params['scale'][:M, :][None] * (t / ff[:, None, None])

    x1 = rms(x)
    Rm = R[:M]
    heads = []
    for h in range(H):
        q = x1 @ params['wq'][h].T
        k = x1 @ params['wk'][h].T
        v = x1 @ params['wv'][h].T
        qr = jnp.einsum('bmd,mde->bme', q, Rm)
        kr = jnp.einsum('bmd,mde->bme', k, Rm)
        s = jnp.einsum('bqd,bkd->bqk', qr, kr) / math.sqrt(D)
        mask = jnp.tril(jnp.ones((M, M), bool))
        s = jnp.where(mask[None], s, -jnp.inf)
        p = jax.nn.softmax(s, axis=-1)
        heads.append(jnp.einsum('bqk,bkd->bqd', p, v))
    cat = jnp.concatenate(heads, axis=-1)
    attn = cat @ params['wo'].T + params['bo']
    x2 = x1 + attn
    x3 = rms(x2)
    h1 = x3 @ params['w1'].T + params['b1']
    g = h1 @ params['wg'].T + params['bg']
    lin = h1 @ params['wl'].T + params['bl']
    return x3 + (g * jax.nn.sigmoid(params['beta'] * g)) * lin


# ---------------------------------------------------------------------------
# Deterministic parameter init (shapes per the module __init__)
# ---------------------------------------------------------------------------
def init_params(key, ctx, D, H):
    keys = jax.random.split(key, 3 * H + 8)
    it = iter(keys)

    def lin_w(out_f, in_f):
        bound = 1.0 / math.sqrt(in_f)
        return jax.random.uniform(next(it), (out_f, in_f), jnp.float32, -bound, bound)

    def lin_b(out_f, in_f):
        bound = 1.0 / math.sqrt(in_f)
        return jax.random.uniform(next(it), (out_f,), jnp.float32, -bound, bound)

    return {
        'scale': jnp.ones((ctx, D), jnp.float32),              # RMSNorm scale
        'wq': jnp.stack([lin_w(D, D) for _ in range(H)]),      # per-head, (out,in)
        'wk': jnp.stack([lin_w(D, D) for _ in range(H)]),
        'wv': jnp.stack([lin_w(D, D) for _ in range(H)]),
        'wo': lin_w(D, H * D), 'bo': lin_b(D, H * D),          # head-merge linear
        'w1': lin_w(D, D), 'b1': lin_b(D, D),                  # feedforward[0]
        'wg': lin_w(D, D), 'bg': lin_b(D, D),                  # SwiGLU.linear_gate
        'wl': lin_w(D, D), 'bl': lin_b(D, D),                  # SwiGLU.linear
        'beta': jnp.ones((1,), jnp.float32),                   # SwiGLU.beta
    }


if __name__ == "__main__":
    config = {'d_model': 32, 'context_window': 16, 'n_heads': 2}
    B, M = 2, 8                          # batch, seq_len (<= context_window)
    D, ctx, H = config['d_model'], config['context_window'], config['n_heads']

    key = jax.random.PRNGKey(0)
    kx, kp = jax.random.split(key)
    x = jax.random.normal(kx, (B, M, D), jnp.float32)
    params = init_params(kp, ctx, D, H)

    cos_full, sin_full = rope_cos_sin(ctx, D)
    P = pair_swap_matrix(D)

    out = llama_block_pallas(x, params,
                             jnp.asarray(cos_full), jnp.asarray(sin_full),
                             jnp.asarray(P))
    out = jax.block_until_ready(out)

    ref = llama_block_reference(x, params, jnp.asarray(get_rotary_matrix_np(ctx, D)))
    # bf16 weights / matmul inputs (f32 accumulation) -> wider tolerance vs f32 ref.
    np.testing.assert_allclose(np.asarray(out), np.asarray(ref), rtol=2e-2, atol=2e-2)

    print("KERNEL_OK")
</pallas_src>

<mosaic_0001>
module attributes {stable_mosaic.version = 11 : i64} {
  func.func @llama_block_kernel(%arg0: i32, %arg1: memref<1x8x32xf32, #tpu.memory_space<vmem>>, %arg2: memref<8x32xf32, #tpu.memory_space<vmem>>, %arg3: memref<8x64xf32, #tpu.memory_space<vmem>>, %arg4: memref<8x64xf32, #tpu.memory_space<vmem>>, %arg5: memref<32x320xbf16, #tpu.memory_space<vmem>>, %arg6: memref<64x32xbf16, #tpu.memory_space<vmem>>, %arg7: memref<1x32xf32, #tpu.memory_space<vmem>>, %arg8: memref<32x32xbf16, #tpu.memory_space<vmem>>, %arg9: memref<1x32xf32, #tpu.memory_space<vmem>>, %arg10: memref<32x64xbf16, #tpu.memory_space<vmem>>, %arg11: memref<1x64xf32, #tpu.memory_space<vmem>>, %arg12: memref<1x1xf32, #tpu.memory_space<smem>>, %arg13: memref<1x8x32xf32, #tpu.memory_space<vmem>>) attributes {dimension_semantics = [#tpu.dimension_semantics<parallel>], iteration_bounds = array<i64: 2>, scalar_prefetch = 0 : i64, scratch_operands = 0 : i64, tpu.core_type = #tpu.core_type<tc>, window_params = [{transform_indices = @transform_0, window_bounds = array<i64: 1, 8, 32>}, {pipeline_mode = #tpu.pipeline_mode<synchronous>, transform_indices = @transform_1, window_bounds = array<i64: 8, 32>}, {pipeline_mode = #tpu.pipeline_mode<synchronous>, transform_indices = @transform_2, window_bounds = array<i64: 8, 64>}, {pipeline_mode = #tpu.pipeline_mode<synchronous>, transform_indices = @transform_3, window_bounds = array<i64: 8, 64>}, {pipeline_mode = #tpu.pipeline_mode<synchronous>, transform_indices = @transform_4, window_bounds = array<i64: 32, 320>}, {pipeline_mode = #tpu.pipeline_mode<synchronous>, transform_indices = @transform_5, window_bounds = array<i64: 64, 32>}, {pipeline_mode = #tpu.pipeline_mode<synchronous>, transform_indices = @transform_6, window_bounds = array<i64: 1, 32>}, {pipeline_mode = #tpu.pipeline_mode<synchronous>, transform_indices = @transform_7, window_bounds = array<i64: 32, 32>}, {pipeline_mode = #tpu.pipeline_mode<synchronous>, transform_indices = @transform_8, window_bounds = array<i64: 1, 32>}, {pipeline_mode = #tpu.pipeline_mode<synchronous>, transform_indices = @transform_9, window_bounds = array<i64: 32, 64>}, {pipeline_mode = #tpu.pipeline_mode<synchronous>, transform_indices = @transform_10, window_bounds = array<i64: 1, 64>}, {transform_indices = @transform_11, window_bounds = array<i64: 1, 1>}, {transform_indices = @transform_12, window_bounds = array<i64: 1, 8, 32>}]} {
    %c0 = arith.constant 0 : index
    %c0_0 = arith.constant 0 : index
    %0 = vector.load %arg2[%c0, %c0_0] : memref<8x32xf32, #tpu.memory_space<vmem>>, vector<8x32xf32>
    %c0_1 = arith.constant 0 : index
    %c0_2 = arith.constant 0 : index
    %c0_3 = arith.constant 0 : index
    %1 = vector.load %arg1[%c0_1, %c0_2, %c0_3] : memref<1x8x32xf32, #tpu.memory_space<vmem>>, vector<1x8x32xf32>
    %2 = vector.shape_cast %1 : vector<1x8x32xf32> to vector<8x32xf32>
    %3 = arith.mulf %2, %2 : vector<8x32xf32>
    %4 = vector.shape_cast %3 : vector<8x32xf32> to vector<1x8x32xf32>
    %cst = arith.constant dense<0.000000e+00> : vector<1xf32>
    %5 = vector.multi_reduction <add>, %4, %cst [1, 2] : vector<1x8x32xf32> to vector<1xf32>
    %6 = vector.shape_cast %5 : vector<1xf32> to vector<1x1x1xf32>
    %7 = vector.extract %6[0, 0, 0] : f32 from vector<1x1x1xf32>
    %8 = vector.broadcast %7 : f32 to vector<1x1xf32>
    %9 = math.rsqrt %8 : vector<1x1xf32>
    %cst_4 = arith.constant 1.600000e+01 : f32
    %10 = vector.broadcast %cst_4 : f32 to vector<1x1xf32>
    %11 = arith.mulf %9, %10 : vector<1x1xf32>
    %12 = vector.broadcast %11 : vector<1x1xf32> to vector<8x32xf32>
    %13 = arith.mulf %2, %12 : vector<8x32xf32>
    %14 = arith.mulf %0, %13 : vector<8x32xf32>
    %15 = arith.truncf %14 : vector<8x32xf32> to vector<8x32xbf16>
    %c0_5 = arith.constant 0 : index
    %c0_6 = arith.constant 0 : index
    %16 = vector.load %arg5[%c0_5, %c0_6] : memref<32x320xbf16, #tpu.memory_space<vmem>>, vector<32x320xbf16>
    %cst_7 = arith.constant dense<0.000000e+00> : vector<8x320xf32>
    %17 = tpu.matmul %15, %16, %cst_7 {dimension_numbers = #tpu.dot_dimension_numbers<[1], [0], [0], [1], [0, 0, 1, 1], [], []>} : vector<8x32xbf16>, vector<32x320xbf16>, vector<8x320xf32> -> vector<8x320xf32>
    %18 = vector.extract_strided_slice %17 {offsets = [0, 0], sizes = [8, 64], strides = [1, 1]} : vector<8x320xf32> to vector<8x64xf32>
    %19 = vector.extract_strided_slice %17 {offsets = [0, 64], sizes = [8, 64], strides = [1, 1]} : vector<8x320xf32> to vector<8x64xf32>
    %20 = vector.extract_strided_slice %17 {offsets = [0, 128], sizes = [8, 64], strides = [1, 1]} : vector<8x320xf32> to vector<8x64xf32>
    %21 = vector.extract_strided_slice %17 {offsets = [0, 192], sizes = [8, 64], strides = [1, 1]} : vector<8x320xf32> to vector<8x64xf32>
    %22 = vector.extract_strided_slice %17 {offsets = [0, 256], sizes = [8, 64], strides = [1, 1]} : vector<8x320xf32> to vector<8x64xf32>
    %c0_8 = arith.constant 0 : index
    %c0_9 = arith.constant 0 : index
    %23 = vector.load %arg3[%c0_8, %c0_9] : memref<8x64xf32, #tpu.memory_space<vmem>>, vector<8x64xf32>
    %c0_10 = arith.constant 0 : index
    %c0_11 = arith.constant 0 : index
    %24 = vector.load %arg4[%c0_10, %c0_11] : memref<8x64xf32, #tpu.memory_space<vmem>>, vector<8x64xf32>
    %25 = arith.mulf %18, %23 : vector<8x64xf32>
    %26 = arith.mulf %19, %24 : vector<8x64xf32>
    %27 = arith.addf %25, %26 : vector<8x64xf32>
    %28 = arith.mulf %20, %23 : vector<8x64xf32>
    %29 = arith.mulf %21, %24 : vector<8x64xf32>
    %30 = arith.addf %28, %29 : vector<8x64xf32>
    %31 = tpu.iota {dimensions = array<i32: 0>} : vector<8x8xi32>
    %32 = tpu.iota {dimensions = array<i32: 1>} : vector<8x8xi32>
    %33 = arith.cmpi sge, %31, %32 : vector<8x8xi32>
    %34 = vector.extract_strided_slice %27 {offsets = [0, 0], sizes = [8, 32], strides = [1, 1]} : vector<8x64xf32> to vector<8x32xf32>
    %35 = vector.extract_strided_slice %30 {offsets = [0, 0], sizes = [8, 32], strides = [1, 1]} : vector<8x64xf32> to vector<8x32xf32>
    %cst_12 = arith.constant dense<0.000000e+00> : vector<8x8xf32>
    %36 = tpu.matmul %34, %35, %cst_12 {dimension_numbers = #tpu.dot_dimension_numbers<[1], [1], [0], [0], [0, 0, 1, 0], [], []>} : vector<8x32xf32>, vector<8x32xf32>, vector<8x8xf32> -> vector<8x8xf32>
    %cst_13 = arith.constant -1.000000e+30 : f32
    %37 = vector.broadcast %cst_13 : f32 to vector<8x8xf32>
    %38 = arith.select %33, %36, %37 : vector<8x8xi1>, vector<8x8xf32>
    %cst_14 = arith.constant dense<0xFF800000> : vector<8xf32>
    %39 = vector.multi_reduction <maximumf>, %38, %cst_14 [1] : vector<8x8xf32> to vector<8xf32>
    %40 = vector.shape_cast %39 : vector<8xf32> to vector<8x1xf32>
    %41 = vector.broadcast %40 : vector<8x1xf32> to vector<8x8xf32>
    %42 = arith.subf %38, %41 : vector<8x8xf32>
    %43 = math.exp %42 : vector<8x8xf32>
    %cst_15 = arith.constant dense<0.000000e+00> : vector<8xf32>
    %44 = vector.multi_reduction <add>, %43, %cst_15 [1] : vector<8x8xf32> to vector<8xf32>
    %45 = vector.shape_cast %44 : vector<8xf32> to vector<8x1xf32>
    %46 = tpu.reciprocal %45 {approx = true} : vector<8x1xf32> -> vector<8x1xf32>
    %47 = vector.broadcast %46 : vector<8x1xf32> to vector<8x8xf32>
    %48 = arith.mulf %43, %47 : vector<8x8xf32>
    %49 = vector.extract_strided_slice %22 {offsets = [0, 0], sizes = [8, 32], strides = [1, 1]} : vector<8x64xf32> to vector<8x32xf32>
    %cst_16 = arith.constant dense<0.000000e+00> : vector<8x32xf32>
    %50 = tpu.matmul %48, %49, %cst_16 {dimension_numbers = #tpu.dot_dimension_numbers<[1], [0], [0], [1], [0, 0, 1, 1], [], []>} : vector<8x8xf32>, vector<8x32xf32>, vector<8x32xf32> -> vector<8x32xf32>
    %51 = vector.extract_strided_slice %27 {offsets = [0, 32], sizes = [8, 32], strides = [1, 1]} : vector<8x64xf32> to vector<8x32xf32>
    %52 = vector.extract_strided_slice %30 {offsets = [0, 32], sizes = [8, 32], strides = [1, 1]} : vector<8x64xf32> to vector<8x32xf32>
    %cst_17 = arith.constant dense<0.000000e+00> : vector<8x8xf32>
    %53 = tpu.matmul %51, %52, %cst_17 {dimension_numbers = #tpu.dot_dimension_numbers<[1], [1], [0], [0], [0, 0, 1, 0], [], []>} : vector<8x32xf32>, vector<8x32xf32>, vector<8x8xf32> -> vector<8x8xf32>
    %cst_18 = arith.constant -1.000000e+30 : f32
    %54 = vector.broadcast %cst_18 : f32 to vector<8x8xf32>
    %55 = arith.select %33, %53, %54 : vector<8x8xi1>, vector<8x8xf32>
    %cst_19 = arith.constant dense<0xFF800000> : vector<8xf32>
    %56 = vector.multi_reduction <maximumf>, %55, %cst_19 [1] : vector<8x8xf32> to vector<8xf32>
    %57 = vector.shape_cast %56 : vector<8xf32> to vector<8x1xf32>
    %58 = vector.broadcast %57 : vector<8x1xf32> to vector<8x8xf32>
    %59 = arith.subf %55, %58 : vector<8x8xf32>
    %60 = math.exp %59 : vector<8x8xf32>
    %cst_20 = arith.constant dense<0.000000e+00> : vector<8xf32>
    %61 = vector.multi_reduction <add>, %60, %cst_20 [1] : vector<8x8xf32> to vector<8xf32>
    %62 = vector.shape_cast %61 : vector<8xf32> to vector<8x1xf32>
    %63 = tpu.reciprocal %62 {approx = true} : vector<8x1xf32> -> vector<8x1xf32>
    %64 = vector.broadcast %63 : vector<8x1xf32> to vector<8x8xf32>
    %65 = arith.mulf %60, %64 : vector<8x8xf32>
    %66 = vector.extract_strided_slice %22 {offsets = [0, 32], sizes = [8, 32], strides = [1, 1]} : vector<8x64xf32> to vector<8x32xf32>
    %cst_21 = arith.constant dense<0.000000e+00> : vector<8x32xf32>
    %67 = tpu.matmul %65, %66, %cst_21 {dimension_numbers = #tpu.dot_dimension_numbers<[1], [0], [0], [1], [0, 0, 1, 1], [], []>} : vector<8x8xf32>, vector<8x32xf32>, vector<8x32xf32> -> vector<8x32xf32>
    %68 = tpu.concatenate %50, %67 in 1 : vector<8x32xf32>, vector<8x32xf32> -> vector<8x64xf32>
    %69 = arith.truncf %68 : vector<8x64xf32> to vector<8x64xbf16>
    %c0_22 = arith.constant 0 : index
    %c0_23 = arith.constant 0 : index
    %70 = vector.load %arg6[%c0_22, %c0_23] : memref<64x32xbf16, #tpu.memory_space<vmem>>, vector<64x32xbf16>
    %cst_24 = arith.constant dense<0.000000e+00> : vector<8x32xf32>
    %71 = tpu.matmul %69, %70, %cst_24 {dimension_numbers = #tpu.dot_dimension_numbers<[1], [0], [0], [1], [0, 0, 1, 1], [], []>} : vector<8x64xbf16>, vector<64x32xbf16>, vector<8x32xf32> -> vector<8x32xf32>
    %c0_25 = arith.constant 0 : index
    %c0_26 = arith.constant 0 : index
    %72 = vector.load %arg7[%c0_25, %c0_26] : memref<1x32xf32, #tpu.memory_space<vmem>>, vector<1x32xf32>
    %73 = vector.broadcast %72 : vector<1x32xf32> to vector<8x32xf32>
    %74 = arith.addf %71, %73 : vector<8x32xf32>
    %75 = arith.addf %14, %74 : vector<8x32xf32>
    %76 = arith.mulf %75, %75 : vector<8x32xf32>
    %77 = vector.shape_cast %76 : vector<8x32xf32> to vector<1x8x32xf32>
    %cst_27 = arith.constant dense<0.000000e+00> : vector<1xf32>
    %78 = vector.multi_reduction <add>, %77, %cst_27 [1, 2] : vector<1x8x32xf32> to vector<1xf32>
    %79 = vector.shape_cast %78 : vector<1xf32> to vector<1x1x1xf32>
    %80 = vector.extract %79[0, 0, 0] : f32 from vector<1x1x1xf32>
    %81 = vector.broadcast %80 : f32 to vector<1x1xf32>
    %82 = math.rsqrt %81 : vector<1x1xf32>
    %cst_28 = arith.constant 1.600000e+01 : f32
    %83 = vector.broadcast %cst_28 : f32 to vector<1x1xf32>
    %84 = arith.mulf %82, %83 : vector<1x1xf32>
    %85 = vector.broadcast %84 : vector<1x1xf32> to vector<8x32xf32>
    %86 = arith.mulf %75, %85 : vector<8x32xf32>
    %87 = arith.mulf %0, %86 : vector<8x32xf32>
    %88 = arith.truncf %87 : vector<8x32xf32> to vector<8x32xbf16>
    %c0_29 = arith.constant 0 : index
    %c0_30 = arith.constant 0 : index
    %89 = vector.load %arg8[%c0_29, %c0_30] : memref<32x32xbf16, #tpu.memory_space<vmem>>, vector<32x32xbf16>
    %cst_31 = arith.constant dense<0.000000e+00> : vector<8x32xf32>
    %90 = tpu.matmul %88, %89, %cst_31 {dimension_numbers = #tpu.dot_dimension_numbers<[1], [0], [0], [1], [0, 0, 1, 1], [], []>} : vector<8x32xbf16>, vector<32x32xbf16>, vector<8x32xf32> -> vector<8x32xf32>
    %c0_32 = arith.constant 0 : index
    %c0_33 = arith.constant 0 : index
    %91 = vector.load %arg9[%c0_32, %c0_33] : memref<1x32xf32, #tpu.memory_space<vmem>>, vector<1x32xf32>
    %92 = vector.broadcast %91 : vector<1x32xf32> to vector<8x32xf32>
    %93 = arith.addf %90, %92 : vector<8x32xf32>
    %94 = arith.truncf %93 : vector<8x32xf32> to vector<8x32xbf16>
    %c0_34 = arith.constant 0 : index
    %c0_35 = arith.constant 0 : index
    %95 = vector.load %arg10[%c0_34, %c0_35] : memref<32x64xbf16, #tpu.memory_space<vmem>>, vector<32x64xbf16>
    %cst_36 = arith.constant dense<0.000000e+00> : vector<8x64xf32>
    %96 = tpu.matmul %94, %95, %cst_36 {dimension_numbers = #tpu.dot_dimension_numbers<[1], [0], [0], [1], [0, 0, 1, 1], [], []>} : vector<8x32xbf16>, vector<32x64xbf16>, vector<8x64xf32> -> vector<8x64xf32>
    %c0_37 = arith.constant 0 : index
    %c0_38 = arith.constant 0 : index
    %97 = vector.load %arg11[%c0_37, %c0_38] : memref<1x64xf32, #tpu.memory_space<vmem>>, vector<1x64xf32>
    %98 = vector.broadcast %97 : vector<1x64xf32> to vector<8x64xf32>
    %99 = arith.addf %96, %98 : vector<8x64xf32>
    %100 = vector.extract_strided_slice %99 {offsets = [0, 0], sizes = [8, 32], strides = [1, 1]} : vector<8x64xf32> to vector<8x32xf32>
    %101 = vector.extract_strided_slice %99 {offsets = [0, 32], sizes = [8, 32], strides = [1, 1]} : vector<8x64xf32> to vector<8x32xf32>
    %c0_39 = arith.constant 0 : index
    %c0_40 = arith.constant 0 : index
    %102 = memref.load %arg12[%c0_39, %c0_40] : memref<1x1xf32, #tpu.memory_space<smem>>
    %103 = vector.broadcast %102 : f32 to vector<8x32xf32>
    %104 = arith.mulf %103, %100 : vector<8x32xf32>
    %105 = arith.negf %104 : vector<8x32xf32>
    %106 = math.exp %105 : vector<8x32xf32>
    %cst_41 = arith.constant 1.000000e+00 : f32
    %107 = vector.broadcast %cst_41 : f32 to vector<8x32xf32>
    %108 = arith.addf %107, %106 : vector<8x32xf32>
    %109 = arith.divf %107, %108 : vector<8x32xf32>
    %110 = arith.mulf %100, %109 : vector<8x32xf32>
    %111 = arith.mulf %110, %101 : vector<8x32xf32>
    %112 = arith.addf %87, %111 : vector<8x32xf32>
    %c0_42 = arith.constant 0 : index
    %c0_43 = arith.constant 0 : index
    %c0_44 = arith.constant 0 : index
    %113 = vector.load %arg13[%c0_42, %c0_43, %c0_44] : memref<1x8x32xf32, #tpu.memory_space<vmem>>, vector<1x8x32xf32>
    %114 = vector.shape_cast %113 : vector<1x8x32xf32> to vector<8x32xf32>
    %115 = vector.shape_cast %112 : vector<8x32xf32> to vector<1x8x32xf32>
    tpu.vector_store %arg13[%c0_42, %c0_43, %c0_44], %115 {strides = array<i32>} : memref<1x8x32xf32, #tpu.memory_space<vmem>>, vector<1x8x32xf32>,
    return
  }
  func.func @transform_0(%arg0: i32) -> (i32, i32, i32) {
    %c0_i32 = arith.constant 0 : i32
    %c0_i32_0 = arith.constant 0 : i32
    %c0_i32_1 = arith.constant 0 : i32
    return %arg0, %c0_i32, %c0_i32_0 : i32, i32, i32
  }
  func.func @transform_1(%arg0: i32) -> (i32, i32) {
    %c0_i32 = arith.constant 0 : i32
    %c0_i32_0 = arith.constant 0 : i32
    %c0_i32_1 = arith.constant 0 : i32
    return %c0_i32, %c0_i32_0 : i32, i32
  }
  func.func @transform_2(%arg0: i32) -> (i32, i32) {
    %c0_i32 = arith.constant 0 : i32
    %c0_i32_0 = arith.constant 0 : i32
    %c0_i32_1 = arith.constant 0 : i32
    return %c0_i32, %c0_i32_0 : i32, i32
  }
  func.func @transform_3(%arg0: i32) -> (i32, i32) {
    %c0_i32 = arith.constant 0 : i32
    %c0_i32_0 = arith.constant 0 : i32
    %c0_i32_1 = arith.constant 0 : i32
    return %c0_i32, %c0_i32_0 : i32, i32
  }
  func.func @transform_4(%arg0: i32) -> (i32, i32) {
    %c0_i32 = arith.constant 0 : i32
    %c0_i32_0 = arith.constant 0 : i32
    %c0_i32_1 = arith.constant 0 : i32
    return %c0_i32, %c0_i32_0 : i32, i32
  }
  func.func @transform_5(%arg0: i32) -> (i32, i32) {
    %c0_i32 = arith.constant 0 : i32
    %c0_i32_0 = arith.constant 0 : i32
    %c0_i32_1 = arith.constant 0 : i32
    return %c0_i32, %c0_i32_0 : i32, i32
  }
  func.func @transform_6(%arg0: i32) -> (i32, i32) {
    %c0_i32 = arith.constant 0 : i32
    %c0_i32_0 = arith.constant 0 : i32
    %c0_i32_1 = arith.constant 0 : i32
    return %c0_i32, %c0_i32_0 : i32, i32
  }
  func.func @transform_7(%arg0: i32) -> (i32, i32) {
    %c0_i32 = arith.constant 0 : i32
    %c0_i32_0 = arith.constant 0 : i32
    %c0_i32_1 = arith.constant 0 : i32
    return %c0_i32, %c0_i32_0 : i32, i32
  }
  func.func @transform_8(%arg0: i32) -> (i32, i32) {
    %c0_i32 = arith.constant 0 : i32
    %c0_i32_0 = arith.constant 0 : i32
    %c0_i32_1 = arith.constant 0 : i32
    return %c0_i32, %c0_i32_0 : i32, i32
  }
  func.func @transform_9(%arg0: i32) -> (i32, i32) {
    %c0_i32 = arith.constant 0 : i32
    %c0_i32_0 = arith.constant 0 : i32
    %c0_i32_1 = arith.constant 0 : i32
    return %c0_i32, %c0_i32_0 : i32, i32
  }
  func.func @transform_10(%arg0: i32) -> (i32, i32) {
    %c0_i32 = arith.constant 0 : i32
    %c0_i32_0 = arith.constant 0 : i32
    %c0_i32_1 = arith.constant 0 : i32
    return %c0_i32, %c0_i32_0 : i32, i32
  }
  func.func @transform_11(%arg0: i32) -> (i32, i32) {
    %c0_i32 = arith.constant 0 : i32
    %c0_i32_0 = arith.constant 0 : i32
    %c0_i32_1 = arith.constant 0 : i32
    return %c0_i32, %c0_i32_0 : i32, i32
  }
  func.func @transform_12(%arg0: i32) -> (i32, i32, i32) {
    %c0_i32 = arith.constant 0 : i32
    %c0_i32_0 = arith.constant 0 : i32
    %c0_i32_1 = arith.constant 0 : i32
    return %arg0, %c0_i32, %c0_i32_0 : i32, i32, i32
  }
}

</mosaic_0001>

<llo_original>
// kernel: tpu_custom_call.1
$region0: #{tpu_custom_call.1}
  #allocation0 [shape = 'u32[]', space=smem, size = 0x4, offset = 0x4, fixed_abs, tag = 'smem constant byte address 0x4 - core index']
  #allocation1 [shape = 'u32[144,128]{1,0:T(1,128)}', space=vmem, size = 0x12000, scoped, tag = 'internal scratch']
  #allocation2 [shape = 'f32[1,1]{1,0:T(1,128)S(6)}', space=smem, size = 0x200, scoped, tag = 'scoped memory for tpu_custom_call.1']
  %s0 = inlined_call_operand.hbm [shape: f32[2,8,32], index: 0, kind: input, shape index: {}]
  %s1 = inlined_call_operand.hbm [shape: f32[8,32], index: 1, kind: input, shape index: {}]
  %s2 = inlined_call_operand.hbm [shape: f32[8,64], index: 2, kind: input, shape index: {}]
  %s3 = inlined_call_operand.hbm [shape: f32[8,64], index: 3, kind: input, shape index: {}]
  %s4 = inlined_call_operand.vmem [shape: bf16[32,320], index: 4, kind: input, shape index: {}]
  %s5 = inlined_call_operand.vmem [shape: bf16[64,32], index: 5, kind: input, shape index: {}]
  %s6 = inlined_call_operand.vmem [shape: f32[1,32], index: 6, kind: input, shape index: {}]
  %s7 = inlined_call_operand.hbm [shape: bf16[32,32], index: 7, kind: input, shape index: {}]
  %s8 = inlined_call_operand.vmem [shape: f32[1,32], index: 8, kind: input, shape index: {}]
  %s9 = inlined_call_operand.vmem [shape: bf16[32,64], index: 9, kind: input, shape index: {}]
  %s10 = inlined_call_operand.vmem [shape: f32[1,64], index: 10, kind: input, shape index: {}]
  %s11 = inlined_call_operand.<no memory space> [shape: f32[1,1], index: 11, kind: input, shape index: {}]
  %s12 = inlined_call_operand.hbm [shape: f32[2,8,32], index: 12, kind: output, shape index: {}]
  %s13 = sld [smem:[#allocation0]]
  $region101: #{tpu_custom_call.1} parent=0
    _
  %s15 = ssub.s32 1, %s13
  %s16 = scalar_select 0, %s15, %s13
  %17 = sst [smem:[#allocation2]] %s11
  $region1: #{tpu_custom_call.1} parent=0
    #allocation3 [shape = 'u8[8192]{0}', space=vmem, size = 0x2000, scoped, tag = 'input window, operand 0']
    #allocation4 [shape = 's32[2]{0}', space=sflag, size = 0x8, scoped, tag = 'scoped memory for tpu_custom_call.1']
    #allocation5 [shape = 's32[2]{0}', space=sflag, size = 0x8, scoped, tag = 'scoped memory for tpu_custom_call.1']
    #allocation6 [shape = 'u8[4096]{0}', space=vmem, size = 0x1000, scoped, tag = 'input window, operand 1, single buffered']
    #allocation7 [shape = 's32[1]{0}', space=sflag, size = 0x4, scoped, tag = 'scoped memory for tpu_custom_call.1']
    #allocation8 [shape = 'u8[4096]{0}', space=vmem, size = 0x1000, scoped, tag = 'input window, operand 2, single buffered']
    #allocation9 [shape = 'u8[4096]{0}', space=vmem, size = 0x1000, scoped, tag = 'input window, operand 3, single buffered']
    #allocation10 [shape = 's32[1]{0}', space=sflag, size = 0x4, scoped, tag = 'scoped memory for tpu_custom_call.1']
    #allocation11 [shape = 'u8[8192]{0}', space=vmem, size = 0x2000, scoped, tag = 'input window, operand 7, single buffered']
    #allocation12 [shape = 'u8[8192]{0}', space=vmem, size = 0x2000, scoped, tag = 'output window, operand 0']
    %18 = vsyncpa [#allocation4], 0
    %s19 = scalar_lea.sflag [#allocation4], 1
    %20 = vsyncpa %s19, 0
    %21 = vsyncpa [#allocation7], 0
    %22 = vsyncpa [#allocation10], 0
    %23 = vsyncpa [#allocation5], 0
    %s24 = scalar_lea.sflag [#allocation5], 1
    %25 = vsyncpa %s24, 0
    loop: start=0, step=1, limit=4
    $region2: #{tpu_custom_call.1} parent=1 // loop_pre_header
      _
    $region3: #{tpu_custom_call.1} parent=1 // loop_header
      %s27 = sphi 0, %s31
      %p28 = scmp.ge.s32.totalorder %s27, 4
      %s37 = sphi 0, %s39
      %s40 = sphi 0, %s37
      %s41 = sphi 0, %s40
      %s57 = sphi 0, %s41
      %s61 = sphi 0, %s61
      %s63 = sphi 0, %s61
      %s64 = sphi 0, %s63
      %s78 = sphi 0, %s64
      %s82 = sphi 0, %s82
      %s84 = sphi 0, %s82
      %s85 = sphi 0, %s84
      %s99 = sphi 0, %s85
      %s103 = sphi 0, %s103
      %s105 = sphi 0, %s103
      %s106 = sphi 0, %s105
      %s120 = sphi 0, %s106
      %s124 = sphi 0, %s124
      %s126 = sphi 0, %s124
      %s127 = sphi 0, %s126
      %s141 = sphi 0, %s127
      %s145 = sphi 0, %s145
      %s147 = sphi 0, %s145
      %s148 = sphi 0, %s147
      %s162 = sphi 0, %s148
      %s166 = sphi 0, %s166
      %s168 = sphi 0, %s166
      %s169 = sphi 0, %s168
      %s183 = sphi 0, %s169
      %s187 = sphi 0, %s187
      %s189 = sphi 0, %s187
      %s190 = sphi 0, %s189
      %s204 = sphi 0, %s190
      %s208 = sphi 0, %s208
      %s210 = sphi 0, %s208
      %s211 = sphi 0, %s210
      %s225 = sphi 0, %s211
      %s229 = sphi 0, %s229
      %s231 = sphi 0, %s229
      %s232 = sphi 0, %s231
      %s246 = sphi 0, %s232
      %s250 = sphi 0, %s250
      %s252 = sphi 0, %s250
      %s253 = sphi 0, %s252
      %s267 = sphi 0, %s253
      %s271 = sphi 0, %s271
      %s273 = sphi 0, %s271
      %s274 = sphi 0, %s273
      %s288 = sphi 0, %s274
      %s294 = sphi 0, %s296
      %s297 = sphi 0, %s294
      %s298 = sphi 0, %s297
      %s314 = sphi 0, %s298
    $region4: #{tpu_custom_call.1} parent=1 // loop_header_branch
      %30 = sbr.rel (%p28) target = $region8
    $region5: #{tpu_custom_call.1} parent=1 // loop_body
      %s32 = ssub.s32 %s27, 1
      %s33 = ssub.s32 %s27, 2
      %s34 = sadd.s32 %s27, 1
      %s35 = ssub.s32 %s27, %s34
      %p36 = scmp.eq.s32.totalorder %s35, 0
      %s38 = sadd.s32 %s37, 1
      %s39 = scalar_select %p36, %s37, %s38
      %p42 = pneg %p36
      %p43 = scmp.eq.s32.totalorder %s27, 1
      %p44 = por %p42, %p43
      %p45 = scmp.ne.s32.totalorder %s37, %s40
      %p46 = scmp.eq.s32.totalorder %s27, 0
      %p47 = por %p45, %p46
      %p48 = scmp.ne.s32.totalorder %s37, %s40
      %p49 = scmp.eq.s32.totalorder %s32, 1
      %p50 = por %p48, %p49
      %p51 = scmp.ne.s32.totalorder %s40, %s41
      %p52 = scmp.eq.s32.totalorder %s32, 0
      %p53 = por %p51, %p52
      %p54 = scmp.ne.s32.totalorder %s40, %s41
      %p55 = scmp.eq.s32.totalorder %s33, 1
      %p56 = por %p54, %p55
      %p58 = scmp.ne.s32.totalorder %s41, %s57
      %p59 = scmp.eq.s32.totalorder %s33, 0
      %p60 = por %p58, %p59
      %s62 = sadd.s32 %s61, 1
      %p65 = scmp.eq.s32.totalorder %s27, 1
      %p66 = scmp.ne.s32.totalorder %s61, %s63
      %p67 = scmp.eq.s32.totalorder %s27, 0
      %p68 = por %p66, %p67
      %p69 = scmp.ne.s32.totalorder %s61, %s63
      %p70 = scmp.eq.s32.totalorder %s32, 1
      %p71 = por %p69, %p70
      %p72 = scmp.ne.s32.totalorder %s63, %s64
      %p73 = scmp.eq.s32.totalorder %s32, 0
      %p74 = por %p72, %p73
      %p75 = scmp.ne.s32.totalorder %s63, %s64
      %p76 = scmp.eq.s32.totalorder %s33, 1
      %p77 = por %p75, %p76
      %p79 = scmp.ne.s32.totalorder %s64, %s78
      %p80 = scmp.eq.s32.totalorder %s33, 0
      %p81 = por %p79, %p80
      %s83 = sadd.s32 %s82, 1
      %p86 = scmp.eq.s32.totalorder %s27, 1
      %p87 = scmp.ne.s32.totalorder %s82, %s84
      %p88 = scmp.eq.s32.totalorder %s27, 0
      %p89 = por %p87, %p88
      %p90 = scmp.ne.s32.totalorder %s82, %s84
      %p91 = scmp.eq.s32.totalorder %s32, 1
      %p92 = por %p90, %p91
      %p93 = scmp.ne.s32.totalorder %s84, %s85
      %p94 = scmp.eq.s32.totalorder %s32, 0
      %p95 = por %p93, %p94
      %p96 = scmp.ne.s32.totalorder %s84, %s85
      %p97 = scmp.eq.s32.totalorder %s33, 1
      %p98 = por %p96, %p97
      %p100 = scmp.ne.s32.totalorder %s85, %s99
      %p101 = scmp.eq.s32.totalorder %s33, 0
      %p102 = por %p100, %p101
      %s104 = sadd.s32 %s103, 1
      %p107 = scmp.eq.s32.totalorder %s27, 1
      %p108 = scmp.ne.s32.totalorder %s103, %s105
      %p109 = scmp.eq.s32.totalorder %s27, 0
      %p110 = por %p108, %p109
      %p111 = scmp.ne.s32.totalorder %s103, %s105
      %p112 = scmp.eq.s32.totalorder %s32, 1
      %p113 = por %p111, %p112
      %p114 = scmp.ne.s32.totalorder %s105, %s106
      %p115 = scmp.eq.s32.totalorder %s32, 0
      %p116 = por %p114, %p115
      %p117 = scmp.ne.s32.totalorder %s105, %s106
      %p118 = scmp.eq.s32.totalorder %s33, 1
      %p119 = por %p117, %p118
      %p121 = scmp.ne.s32.totalorder %s106, %s120
      %p122 = scmp.eq.s32.totalorder %s33, 0
      %p123 = por %p121, %p122
      %s125 = sadd.s32 %s124, 1
      %p128 = scmp.eq.s32.totalorder %s27, 1
      %p129 = scmp.ne.s32.totalorder %s124, %s126
      %p130 = scmp.eq.s32.totalorder %s27, 0
      %p131 = por %p129, %p130
      %p132 = scmp.ne.s32.totalorder %s124, %s126
      %p133 = scmp.eq.s32.totalorder %s32, 1
      %p134 = por %p132, %p133
      %p135 = scmp.ne.s32.totalorder %s126, %s127
      %p136 = scmp.eq.s32.totalorder %s32, 0
      %p137 = por %p135, %p136
      %p138 = scmp.ne.s32.totalorder %s126, %s127
      %p139 = scmp.eq.s32.totalorder %s33, 1
      %p140 = por %p138, %p139
      %p142 = scmp.ne.s32.totalorder %s127, %s141
      %p143 = scmp.eq.s32.totalorder %s33, 0
      %p144 = por %p142, %p143
      %s146 = sadd.s32 %s145, 1
      %p149 = scmp.eq.s32.totalorder %s27, 1
      %p150 = scmp.ne.s32.totalorder %s145, %s147
      %p151 = scmp.eq.s32.totalorder %s27, 0
      %p152 = por %p150, %p151
      %p153 = scmp.ne.s32.totalorder %s145, %s147
      %p154 = scmp.eq.s32.totalorder %s32, 1
      %p155 = por %p153, %p154
      %p156 = scmp.ne.s32.totalorder %s147, %s148
      %p157 = scmp.eq.s32.totalorder %s32, 0
      %p158 = por %p156, %p157
      %p159 = scmp.ne.s32.totalorder %s147, %s148
      %p160 = scmp.eq.s32.totalorder %s33, 1
      %p161 = por %p159, %p160
      %p163 = scmp.ne.s32.totalorder %s148, %s162
      %p164 = scmp.eq.s32.totalorder %s33, 0
      %p165 = por %p163, %p164
      %s167 = sadd.s32 %s166, 1
      %p170 = scmp.eq.s32.totalorder %s27, 1
      %p171 = scmp.ne.s32.totalorder %s166, %s168
      %p172 = scmp.eq.s32.totalorder %s27, 0
      %p173 = por %p171, %p172
      %p174 = scmp.ne.s32.totalorder %s166, %s168
      %p175 = scmp.eq.s32.totalorder %s32, 1
      %p176 = por %p174, %p175
      %p177 = scmp.ne.s32.totalorder %s168, %s169
      %p178 = scmp.eq.s32.totalorder %s32, 0
      %p179 = por %p177, %p178
      %p180 = scmp.ne.s32.totalorder %s168, %s169
      %p181 = scmp.eq.s32.totalorder %s33, 1
      %p182 = por %p180, %p181
      %p184 = scmp.ne.s32.totalorder %s169, %s183
      %p185 = scmp.eq.s32.totalorder %s33, 0
      %p186 = por %p184, %p185
      %s188 = sadd.s32 %s187, 1
      %p191 = scmp.eq.s32.totalorder %s27, 1
      %p192 = scmp.ne.s32.totalorder %s187, %s189
      %p193 = scmp.eq.s32.totalorder %s27, 0
      %p194 = por %p192, %p193
      %p195 = scmp.ne.s32.totalorder %s187, %s189
      %p196 = scmp.eq.s32.totalorder %s32, 1
      %p197 = por %p195, %p196
      %p198 = scmp.ne.s32.totalorder %s189, %s190
      %p199 = scmp.eq.s32.totalorder %s32, 0
      %p200 = por %p198, %p199
      %p201 = scmp.ne.s32.totalorder %s189, %s190
      %p202 = scmp.eq.s32.totalorder %s33, 1
      %p203 = por %p201, %p202
      %p205 = scmp.ne.s32.totalorder %s190, %s204
      %p206 = scmp.eq.s32.totalorder %s33, 0
      %p207 = por %p205, %p206
      %s209 = sadd.s32 %s208, 1
      %p212 = scmp.eq.s32.totalorder %s27, 1
      %p213 = scmp.ne.s32.totalorder %s208, %s210
      %p214 = scmp.eq.s32.totalorder %s27, 0
      %p215 = por %p213, %p214
      %p216 = scmp.ne.s32.totalorder %s208, %s210
      %p217 = scmp.eq.s32.totalorder %s32, 1
      %p218 = por %p216, %p217
      %p219 = scmp.ne.s32.totalorder %s210, %s211
      %p220 = scmp.eq.s32.totalorder %s32, 0
      %p221 = por %p219, %p220
      %p222 = scmp.ne.s32.totalorder %s210, %s211
      %p223 = scmp.eq.s32.totalorder %s33, 1
      %p224 = por %p222, %p223
      %p226 = scmp.ne.s32.totalorder %s211, %s225
      %p227 = scmp.eq.s32.totalorder %s33, 0
      %p228 = por %p226, %p227
      %s230 = sadd.s32 %s229, 1
      %p233 = scmp.eq.s32.totalorder %s27, 1
      %p234 = scmp.ne.s32.totalorder %s229, %s231
      %p235 = scmp.eq.s32.totalorder %s27, 0
      %p236 = por %p234, %p235
      %p237 = scmp.ne.s32.totalorder %s229, %s231
      %p238 = scmp.eq.s32.totalorder %s32, 1
      %p239 = por %p237, %p238
      %p240 = scmp.ne.s32.totalorder %s231, %s232
      %p241 = scmp.eq.s32.totalorder %s32, 0
      %p242 = por %p240, %p241
      %p243 = scmp.ne.s32.totalorder %s231, %s232
      %p244 = scmp.eq.s32.totalorder %s33, 1
      %p245 = por %p243, %p244
      %p247 = scmp.ne.s32.totalorder %s232, %s246
      %p248 = scmp.eq.s32.totalorder %s33, 0
      %p249 = por %p247, %p248
      %s251 = sadd.s32 %s250, 1
      %p254 = scmp.eq.s32.totalorder %s27, 1
      %p255 = scmp.ne.s32.totalorder %s250, %s252
      %p256 = scmp.eq.s32.totalorder %s27, 0
      %p257 = por %p255, %p256
      %p258 = scmp.ne.s32.totalorder %s250, %s252
      %p259 = scmp.eq.s32.totalorder %s32, 1
      %p260 = por %p258, %p259
      %p261 = scmp.ne.s32.totalorder %s252, %s253
      %p262 = scmp.eq.s32.totalorder %s32, 0
      %p263 = por %p261, %p262
      %p264 = scmp.ne.s32.totalorder %s252, %s253
      %p265 = scmp.eq.s32.totalorder %s33, 1
      %p266 = por %p264, %p265
      %p268 = scmp.ne.s32.totalorder %s253, %s267
      %p269 = scmp.eq.s32.totalorder %s33, 0
      %p270 = por %p268, %p269
      %s272 = sadd.s32 %s271, 1
      %p275 = scmp.eq.s32.totalorder %s27, 1
      %p276 = scmp.ne.s32.totalorder %s271, %s273
      %p277 = scmp.eq.s32.totalorder %s27, 0
      %p278 = por %p276, %p277
      %p279 = scmp.ne.s32.totalorder %s271, %s273
      %p280 = scmp.eq.s32.totalorder %s32, 1
      %p281 = por %p279, %p280
      %p282 = scmp.ne.s32.totalorder %s273, %s274
      %p283 = scmp.eq.s32.totalorder %s32, 0
      %p284 = por %p282, %p283
      %p285 = scmp.ne.s32.totalorder %s273, %s274
      %p286 = scmp.eq.s32.totalorder %s33, 1
      %p287 = por %p285, %p286
      %p289 = scmp.ne.s32.totalorder %s274, %s288
      %p290 = scmp.eq.s32.totalorder %s33, 0
      %p291 = por %p289, %p290
      %s292 = ssub.s32 %s27, %s34
      %p293 = scmp.eq.s32.totalorder %s292, 0
      %s295 = sadd.s32 %s294, 1
      %s296 = scalar_select %p293, %s294, %s295
      %p299 = pneg %p293
      %p300 = scmp.eq.s32.totalorder %s27, 1
      %p301 = por %p299, %p300
      %p302 = scmp.ne.s32.totalorder %s294, %s297
      %p303 = scmp.eq.s32.totalorder %s27, 0
      %p304 = por %p302, %p303
      %p305 = scmp.ne.s32.totalorder %s294, %s297
      %p306 = scmp.eq.s32.totalorder %s32, 1
      %p307 = por %p305, %p306
      %p308 = scmp.ne.s32.totalorder %s297, %s298
      %p309 = scmp.eq.s32.totalorder %s32, 0
      %p310 = por %p308, %p309
      %p311 = scmp.ne.s32.totalorder %s297, %s298
      %p312 = scmp.eq.s32.totalorder %s33, 1
      %p313 = por %p311, %p312
      %p315 = scmp.ne.s32.totalorder %s298, %s314
      %p316 = scmp.eq.s32.totalorder %s33, 0
      %p317 = por %p315, %p316
      %p318 = scmp.le.s32.totalorder 1, %s27
      %p319 = scmp.lt.s32.totalorder %s27, 3
      %p320 = pnand %p318, %p319
      %p321 = pneg %p320
      // Predicated region
      $region9: #{tpu_custom_call.1} parent=5 // pred_check
        _
      $region10: #{tpu_custom_call.1} parent=5 // pred_check_branch
        %323 = sbr.rel (%p320) target = $region12
      $region11: #{tpu_custom_call.1} parent=5 // pred_region
        %s324 = ssub.s32 %s27, 1
        // Predicated region
        $region13: #{tpu_custom_call.1} parent=11 // pred_check
          %p325 = pneg %p74
        $region14: #{tpu_custom_call.1} parent=11 // pred_check_branch
          %327 = sbr.rel (%p325) target = $region16
        $region15: #{tpu_custom_call.1} parent=11 // pred_region
          %s329 = ssub.s32 128, 128
          %330 = vsyncadd [#allocation7], %s329
          %s332 = sshll.u32 [#allocation6], 4
          %s333 = int_to_ptr.vmem [resolvable:$true] %s332
          %335 = dma.hbm_to_vmem [thread:$0]  %s1, 128, %s333, [#allocation7]
        $region16: #{tpu_custom_call.1} parent=11 // pred_fallthru
          _
        // Predicated region
        $region17: #{tpu_custom_call.1} parent=11 // pred_check
          %p336 = pneg %p95
        $region18: #{tpu_custom_call.1} parent=11 // pred_check_branch
          %338 = sbr.rel (%p336) target = $region20
        $region19: #{tpu_custom_call.1} parent=11 // pred_region
          %s340 = ssub.s32 128, 128
          %341 = vsyncadd [#allocation7], %s340
          %s343 = sshll.u32 [#allocation8], 4
          %s344 = int_to_ptr.vmem [resolvable:$true] %s343
          %346 = dma.hbm_to_vmem [thread:$0]  %s2, 128, %s344, [#allocation7]
        $region20: #{tpu_custom_call.1} parent=11 // pred_fallthru
          _
        // Predicated region
        $region21: #{tpu_custom_call.1} parent=11 // pred_check
          %p347 = pneg %p116
        $region22: #{tpu_custom_call.1} parent=11 // pred_check_branch
          %349 = sbr.rel (%p347) target = $region24
        $region23: #{tpu_custom_call.1} parent=11 // pred_region
          %s351 = ssub.s32 128, 128
          %352 = vsyncadd [#allocation10], %s351
          %s354 = sshll.u32 [#allocation9], 4
          %s355 = int_to_ptr.vmem [resolvable:$true] %s354
          %357 = dma.hbm_to_vmem [thread:$0]  %s3, 128, %s355, [#allocation10]
        $region24: #{tpu_custom_call.1} parent=11 // pred_fallthru
          _
        // Predicated region
        $region25: #{tpu_custom_call.1} parent=11 // pred_check
          %p358 = pneg %p137
        $region26: #{tpu_custom_call.1} parent=11 // pred_check_branch
          %360 = sbr.rel (%p358) target = $region28
        $region27: #{tpu_custom_call.1} parent=11 // pred_region
          _
        $region28: #{tpu_custom_call.1} parent=11 // pred_fallthru
          _
        // Predicated region
        $region29: #{tpu_custom_call.1} parent=11 // pred_check
          %p361 = pneg %p158
        $region30: #{tpu_custom_call.1} parent=11 // pred_check_branch
          %363 = sbr.rel (%p361) target = $region32
        $region31: #{tpu_custom_call.1} parent=11 // pred_region
          _
        $region32: #{tpu_custom_call.1} parent=11 // pred_fallthru
          _
        // Predicated region
        $region33: #{tpu_custom_call.1} parent=11 // pred_check
          %p364 = pneg %p179
        $region34: #{tpu_custom_call.1} parent=11 // pred_check_branch
          %366 = sbr.rel (%p364) target = $region36
        $region35: #{tpu_custom_call.1} parent=11 // pred_region
          _
        $region36: #{tpu_custom_call.1} parent=11 // pred_fallthru
          _
        // Predicated region
        $region37: #{tpu_custom_call.1} parent=11 // pred_check
          %p367 = pneg %p200
        $region38: #{tpu_custom_call.1} parent=11 // pred_check_branch
          %369 = sbr.rel (%p367) target = $region40
        $region39: #{tpu_custom_call.1} parent=11 // pred_region
          %s371 = ssub.s32 256, 256
          %372 = vsyncadd [#allocation10], %s371
          %s373 = sshll.u32 [#allocation11], 4
          %s374 = int_to_ptr.vmem [resolvable:$true] %s373
          %379 = dma.hbm_to_vmem [thread:$0]  %s7, 256, %s374, [#allocation10], 64, 64, 4
        $region40: #{tpu_custom_call.1} parent=11 // pred_fallthru
          _
        // Predicated region
        $region41: #{tpu_custom_call.1} parent=11 // pred_check
          %p380 = pneg %p221
        $region42: #{tpu_custom_call.1} parent=11 // pred_check_branch
          %382 = sbr.rel (%p380) target = $region44
        $region43: #{tpu_custom_call.1} parent=11 // pred_region
          _
        $region44: #{tpu_custom_call.1} parent=11 // pred_fallthru
          _
        // Predicated region
        $region45: #{tpu_custom_call.1} parent=11 // pred_check
          %p383 = pneg %p242
        $region46: #{tpu_custom_call.1} parent=11 // pred_check_branch
          %385 = sbr.rel (%p383) target = $region48
        $region47: #{tpu_custom_call.1} parent=11 // pred_region
          _
        $region48: #{tpu_custom_call.1} parent=11 // pred_fallthru
          _
        // Predicated region
        $region49: #{tpu_custom_call.1} parent=11 // pred_check
          %p386 = pneg %p263
        $region50: #{tpu_custom_call.1} parent=11 // pred_check_branch
          %388 = sbr.rel (%p386) target = $region52
        $region51: #{tpu_custom_call.1} parent=11 // pred_region
          _
        $region52: #{tpu_custom_call.1} parent=11 // pred_fallthru
          _
        // Predicated region
        $region53: #{tpu_custom_call.1} parent=11 // pred_check
          %p389 = pneg %p284
        $region54: #{tpu_custom_call.1} parent=11 // pred_check_branch
          %391 = sbr.rel (%p389) target = $region56
        $region55: #{tpu_custom_call.1} parent=11 // pred_region
          _
        $region56: #{tpu_custom_call.1} parent=11 // pred_fallthru
          _
      $region12: #{tpu_custom_call.1} parent=5 // pred_fallthru
        _
      %p392 = scmp.lt.s32.totalorder %s27, 2
      // Predicated region
      $region57: #{tpu_custom_call.1} parent=5 // pred_check
        %p393 = pneg %p392
      $region58: #{tpu_custom_call.1} parent=5 // pred_check_branch
        %395 = sbr.rel (%p393) target = $region60
      $region59: #{tpu_custom_call.1} parent=5 // pred_region
        // Predicated region
        $region61: #{tpu_custom_call.1} parent=59 // pred_check
          %p396 = pneg %p47
        $region62: #{tpu_custom_call.1} parent=59 // pred_check_branch
          %398 = sbr.rel (%p396) target = $region64
        $region63: #{tpu_custom_call.1} parent=59 // pred_region
          %s399 = sand.u32 %s37, 1
          %s400 = scalar_lea.sflag [#allocation4], %s399
          %s401 = sand.u32 %s37, 1
          %s402 = smul.addr %s401, 8
          %s403 = scalar_lea.vmem [#allocation3], %s402
          %s405 = ssub.s32 128, 128
          %406 = vsyncadd %s400, %s405
          %s407 = smul.addr %s27, 128
          %s408 = scalar_lea.hbm %s0, %s407
          %s410 = sshll.u32 %s403, 4
          %s411 = int_to_ptr.vmem [resolvable:$true] %s410
          %413 = dma.hbm_to_vmem [thread:$0]  %s408, 128, %s411, %s400
        $region64: #{tpu_custom_call.1} parent=59 // pred_fallthru
          _
      $region60: #{tpu_custom_call.1} parent=5 // pred_fallthru
        _
      %p414 = scmp.le.s32.totalorder 1, %s27
      %p415 = scmp.lt.s32.totalorder %s27, 3
      %p416 = pnand %p414, %p415
      %p417 = pneg %p416
      // Predicated region
      $region65: #{tpu_custom_call.1} parent=5 // pred_check
        _
      $region66: #{tpu_custom_call.1} parent=5 // pred_check_branch
        %419 = sbr.rel (%p416) target = $region68
      $region67: #{tpu_custom_call.1} parent=5 // pred_region
        %s420 = ssub.s32 %s27, 1
        %s421 = sand.u32 %s40, 1
        %s422 = scalar_lea.sflag [#allocation4], %s421
        %s423 = sand.u32 %s40, 1
        %s424 = smul.addr %s423, 8
        %s425 = scalar_lea.vmem [#allocation3], %s424
        // Predicated region
        $region69: #{tpu_custom_call.1} parent=67 // pred_check
          %p426 = pneg %p53
        $region70: #{tpu_custom_call.1} parent=67 // pred_check_branch
          %428 = sbr.rel (%p426) target = $region72
        $region71: #{tpu_custom_call.1} parent=67 // pred_region
          %429 = dma.done %s422, 128
        $region72: #{tpu_custom_call.1} parent=67 // pred_fallthru
          _
        // Predicated region
        $region73: #{tpu_custom_call.1} parent=67 // pred_check
          %p430 = pneg %p74
        $region74: #{tpu_custom_call.1} parent=67 // pred_check_branch
          %432 = sbr.rel (%p430) target = $region76
        $region75: #{tpu_custom_call.1} parent=67 // pred_region
          %433 = dma.done [#allocation7], 128
        $region76: #{tpu_custom_call.1} parent=67 // pred_fallthru
          _
        // Predicated region
        $region77: #{tpu_custom_call.1} parent=67 // pred_check
          %p434 = pneg %p95
        $region78: #{tpu_custom_call.1} parent=67 // pred_check_branch
          %436 = sbr.rel (%p434) target = $region80
        $region79: #{tpu_custom_call.1} parent=67 // pred_region
          %437 = dma.done [#allocation7], 128
        $region80: #{tpu_custom_call.1} parent=67 // pred_fallthru
          _
        // Predicated region
        $region81: #{tpu_custom_call.1} parent=67 // pred_check
          %p438 = pneg %p116
        $region82: #{tpu_custom_call.1} parent=67 // pred_check_branch
          %440 = sbr.rel (%p438) target = $region84
        $region83: #{tpu_custom_call.1} parent=67 // pred_region
          %441 = dma.done [#allocation10], 128
        $region84: #{tpu_custom_call.1} parent=67 // pred_fallthru
          _
        // Predicated region
        $region85: #{tpu_custom_call.1} parent=67 // pred_check
          %p442 = pneg %p200
        $region86: #{tpu_custom_call.1} parent=67 // pred_check_branch
          %444 = sbr.rel (%p442) target = $region88
        $region87: #{tpu_custom_call.1} parent=67 // pred_region
          %445 = dma.done [#allocation10], 256
        $region88: #{tpu_custom_call.1} parent=67 // pred_fallthru
          _
        %s446 = sand.u32 %s40, 1
        %s447 = scalar_lea.sflag [#allocation4], %s446
        %s448 = sand.u32 %s40, 1
        %s449 = smul.addr %s448, 8
        %s450 = scalar_lea.vmem [#allocation3], %s449
        %p451 = pneg %p53
        %p452 = pneg %p50
        %p453 = pneg %p74
        %p454 = pneg %p71
        %p455 = pneg %p95
        %p456 = pneg %p92
        %p457 = pneg %p116
        %p458 = pneg %p113
        %p459 = pneg %p137
        %p460 = pneg %p134
        %p461 = pneg %p158
        %p462 = pneg %p155
        %p463 = pneg %p179
        %p464 = pneg %p176
        %p465 = pneg %p200
        %p466 = pneg %p197
        %p467 = pneg %p221
        %p468 = pneg %p218
        %p469 = pneg %p242
        %p470 = pneg %p239
        %p471 = pneg %p263
        %p472 = pneg %p260
        %p473 = pneg %p284
        %p474 = pneg %p281
        %p475 = pneg %p310
        %p476 = pneg %p307
        %s477 = sand.u32 %s297, 1
        %s478 = scalar_lea.sflag [#allocation5], %s477
        %s479 = sand.u32 %s297, 1
        %s480 = smul.addr %s479, 8
        %s481 = scalar_lea.vmem [#allocation12], %s480
        %v483 = vld [vmem:[#allocation6] sm:$0xff]
        %v484 = vld [vmem:[%s425] sm:$0xff]
        %v485 = vmul.f32 %v484, %v484
        %vm486 = vcmask 261120
        %v487 = vsel %vm486, %v485, 0.0
        %488 = vadd.xlane.f32.xlu0 %v487
        %v489 = vpop.xlane.xlu0 %488
        %v490 = vrot.slane %v489, 4
        %v491 = vadd.f32 %v489, %v490
        %v492 = vrot.slane %v491, 2
        %v493 = vadd.f32 %v491, %v492
        %v494 = vrot.slane %v493, 1
        %v495 = vadd.f32 %v493, %v494
        %s496 = vtos %v495
        %v497 = vstv %s496
        %v498 = vrsqrt.pop %v497
        %v499 = vmul.f32 %v498, 16.0
        %v500 = vmul.f32 %v484, %v499
        %v501 = vmul.f32 %v483, %v500
        %v502 = vpack.c.bf16 %v501, %v501
        %v503 = vld [vmem:[%s4] sm:$0xff]
        %v504 = vld [vmem:[%s4 + $0x8] sm:$0xf]
        %v505 = vld [vmem:[%s4 + $0xc] sm:$0xff]
        %v506 = vld [vmem:[%s4 + $0x14] sm:$0xf]
        %v507 = vld [vmem:[%s4 + $0x18] sm:$0xff]
        %v508 = vld [vmem:[%s4 + $0x20] sm:$0xf]
        %v509 = vld [vmem:[%s4 + $0x24] sm:$0xff]
        %v510 = vld [vmem:[%s4 + $0x2c] sm:$0xf]
        %v519 = vunpack.c.l.b16 %v503
        %v520 = vunpack.c.h.b16 %v503
        %v521 = vunpack.c.l.b16 %v504
        %v522 = vunpack.c.l.b16 %v505
        %v523 = vunpack.c.h.b16 %v505
        %v524 = vunpack.c.l.b16 %v506
        %v525 = vunpack.c.l.b16 %v507
        %v526 = vunpack.c.h.b16 %v507
        %v527 = vunpack.c.l.b16 %v508
        %v528 = vunpack.c.l.b16 %v509
        %v529 = vunpack.c.h.b16 %v509
        %v530 = vunpack.c.l.b16 %v510
        %v531 = vpack.c.b16 %v522, %v519
        %v532 = vpack.c.b16 %v523, %v520
        %v533 = vpack.c.b16 %v524, %v521
        %v534 = vpack.c.b16 %v528, %v525
        %v535 = vpack.c.b16 %v529, %v526
        %v536 = vpack.c.b16 %v530, %v527
        %v544 = vsel %vm486, %v502, 0
        %546 = vmatprep.subr.bf16.mxu0 %v532
        %547 = vmatpush1.bf16.msra.mxu0 %v531
        %548 = vmatprep.subr.bf16.mxu0 %v535
        %549 = vmatpush1.bf16.msra.mxu0 %v534
        %550 = vmatprep.subr.bf16.mxu0 0
        %551 = vmatpush1.bf16.msra.mxu0 0
        %552 = vmatprep.subr.bf16.mxu0 0
        %553 = vmatpush1.bf16.msra.mxu0 0
        %554 = vmatprep.subr.bf16.mxu0 0
        %555 = vmatpush1.bf16.msra.mxu0 0
        %556 = vmatprep.subr.bf16.mxu0 0
        %557 = vmatpush1.bf16.msra.mxu0 0
        %558 = vmatprep.subr.bf16.mxu0 0
        %559 = vmatpush1.bf16.msra.mxu0 0
        %560 = vmatprep.subr.bf16.mxu0 0
        %561 = vmatpush1.bf16.msra.mxu0 0
        %562 = vmatprep.subr.bf16.mxu0 0
        %563 = vmatpush1.bf16.msra.mxu0 0
        %564 = vmatprep.subr.bf16.mxu0 0
        %565 = vmatpush1.bf16.msra.mxu0 0
        %566 = vmatprep.subr.bf16.mxu0 0
        %567 = vmatpush1.bf16.msra.mxu0 0
        %568 = vmatprep.subr.bf16.mxu0 0
        %569 = vmatpush1.bf16.msra.mxu0 0
        %570 = vmatprep.subr.bf16.mxu0 0
        %571 = vmatpush1.bf16.msra.mxu0 0
        %572 = vmatprep.subr.bf16.mxu0 0
        %573 = vmatpush1.bf16.msra.mxu0 0
        %574 = vmatprep.subr.bf16.mxu0 0
        %575 = vmatpush1.bf16.msra.mxu0 0
        %576 = vmatprep.subr.bf16.mxu0 0
        %577 = vmatpush1.bf16.msra.mxu0 0
        %578 = vmatprep.mubr.bf16.mxu0 0
        %579 = vmatmul.mubr.bf16.gmra.mrb[0].mxu0 %v544
        %v580 = vpop.f32.mrb[0].mxu0
        %v581 = vadd.f32 0.0, %v580
        %v582 = vpop.f32.mrb[0].mxu0
        %v583 = vadd.f32 0.0, %v582
        %v584 = vpop.f32.mrb[0].mxu0
        %v585 = vpop.f32.mrb[0].mxu0
        %586 = vdwg.mxu0
        %587 = vmatprep.subr.bf16.mxu0 0
        %588 = vmatpush1.bf16.msra.mxu0 %v533
        %589 = vmatprep.subr.bf16.mxu0 0
        %590 = vmatpush1.bf16.msra.mxu0 %v536
        %591 = vmatprep.subr.bf16.mxu0 0
        %592 = vmatpush1.bf16.msra.mxu0 0
        %593 = vmatprep.subr.bf16.mxu0 0
        %594 = vmatpush1.bf16.msra.mxu0 0
        %595 = vmatprep.subr.bf16.mxu0 0
        %596 = vmatpush1.bf16.msra.mxu0 0
        %597 = vmatprep.subr.bf16.mxu0 0
        %598 = vmatpush1.bf16.msra.mxu0 0
        %599 = vmatprep.subr.bf16.mxu0 0
        %600 = vmatpush1.bf16.msra.mxu0 0
        %601 = vmatprep.subr.bf16.mxu0 0
        %602 = vmatpush1.bf16.msra.mxu0 0
        %603 = vmatprep.subr.bf16.mxu0 0
        %604 = vmatpush1.bf16.msra.mxu0 0
        %605 = vmatprep.subr.bf16.mxu0 0
        %606 = vmatpush1.bf16.msra.mxu0 0
        %607 = vmatprep.subr.bf16.mxu0 0
        %608 = vmatpush1.bf16.msra.mxu0 0
        %609 = vmatprep.subr.bf16.mxu0 0
        %610 = vmatpush1.bf16.msra.mxu0 0
        %611 = vmatprep.subr.bf16.mxu0 0
        %612 = vmatpush1.bf16.msra.mxu0 0
        %613 = vmatprep.subr.bf16.mxu0 0
        %614 = vmatpush1.bf16.msra.mxu0 0
        %615 = vmatprep.subr.bf16.mxu0 0
        %616 = vmatpush1.bf16.msra.mxu0 0
        %617 = vmatprep.subr.bf16.mxu0 0
        %618 = vmatpush1.bf16.msra.mxu0 0
        %619 = vmatprep.mubr.bf16.mxu0 0
        %620 = vmatmul.mubr.bf16.gmra.mrb[0].mxu0 %v544
        %v621 = vpop.f32.mrb[0].mxu0
        %v622 = vadd.f32 0.0, %v621
        %v623 = vpop.f32.mrb[0].mxu0
        %v624 = vpop.f32.mrb[0].mxu0
        %v625 = vpop.f32.mrb[0].mxu0
        %626 = vdwg.mxu0
        %v627 = vld [vmem:[#allocation8] sm:$0xff]
        %v628 = vld [vmem:[#allocation9] sm:$0xff]
        %v629 = vmul.f32 %v581, %v627
        %631 = vrot.lane.b32.xlu0 %v628, 64
        %v632 = vpop.permute.xlu0 %631
        %v634 = vmul.f32 %v581, %v632
        %636 = vrot.lane.b32.xlu0 %v634, 64
        %v637 = vpop.permute.xlu0 %636
        %v639 = vadd.f32 %v629, %v637
        %v640 = vmul.f32 %v583, %v627
        %v641 = vmul.f32 %v583, %v632
        %643 = vrot.lane.b32.xlu0 %v641, 64
        %v644 = vpop.permute.xlu0 %643
        %v646 = vadd.f32 %v640, %v644
        %v647 = vlaneseq
        %v648 = vshrl.u32 %v647, 7
        %v649 = vlaneseq
        %v650 = vand.u32 %v649, 127
        %vm651 = vcmp.ge.s32.totalorder %v648, %v650
        %v653 = vsel %vm486, %v639, 0
        %v656 = vsel %vm486, %v646, 0
        %658 = vmatprep.subr.mxu0 0.0
        %659 = vmatpush1.xpose.msra.mxu0 %v656
        %660 = vmatprep.subr.mxu0 0.0
        %661 = vmatpush1.xpose.msra.mxu0 0.0
        %662 = vmatprep.subr.mxu0 0.0
        %663 = vmatpush1.xpose.msra.mxu0 0.0
        %664 = vmatprep.subr.mxu0 0.0
        %665 = vmatpush1.xpose.msra.mxu0 0.0
        %666 = vmatprep.subr.mxu0 0.0
        %667 = vmatpush1.xpose.msra.mxu0 0.0
        %668 = vmatprep.subr.mxu0 0.0
        %669 = vmatpush1.xpose.msra.mxu0 0.0
        %670 = vmatprep.subr.mxu0 0.0
        %671 = vmatpush1.xpose.msra.mxu0 0.0
        %672 = vmatprep.subr.mxu0 0.0
        %673 = vmatpush1.xpose.msra.mxu0 0.0
        %674 = vmatprep.subr.mxu0 0.0
        %675 = vmatpush1.xpose.msra.mxu0 0.0
        %676 = vmatprep.subr.mxu0 0.0
        %677 = vmatpush1.xpose.msra.mxu0 0.0
        %678 = vmatprep.subr.mxu0 0.0
        %679 = vmatpush1.xpose.msra.mxu0 0.0
        %680 = vmatprep.subr.mxu0 0.0
        %681 = vmatpush1.xpose.msra.mxu0 0.0
        %682 = vmatprep.subr.mxu0 0.0
        %683 = vmatpush1.xpose.msra.mxu0 0.0
        %684 = vmatprep.subr.mxu0 0.0
        %685 = vmatpush1.xpose.msra.mxu0 0.0
        %686 = vmatprep.subr.mxu0 0.0
        %687 = vmatpush1.xpose.msra.mxu0 0.0
        %688 = vmatprep.subr.mxu0 0.0
        %689 = vmatpush1.xpose.msra.mxu0 0.0
        %690 = vmatprep.subr.mxu0 0.0
        %691 = vmatpush1.xpose.msra.mxu0 0.0
        %692 = vmatprep.subr.mxu0 0.0
        %693 = vmatpush1.xpose.msra.mxu0 0.0
        %694 = vmatprep.subr.mxu0 0.0
        %695 = vmatpush1.xpose.msra.mxu0 0.0
        %696 = vmatprep.subr.mxu0 0.0
        %697 = vmatpush1.xpose.msra.mxu0 0.0
        %698 = vmatprep.subr.mxu0 0.0
        %699 = vmatpush1.xpose.msra.mxu0 0.0
        %700 = vmatprep.subr.mxu0 0.0
        %701 = vmatpush1.xpose.msra.mxu0 0.0
        %702 = vmatprep.subr.mxu0 0.0
        %703 = vmatpush1.xpose.msra.mxu0 0.0
        %704 = vmatprep.subr.mxu0 0.0
        %705 = vmatpush1.xpose.msra.mxu0 0.0
        %706 = vmatprep.subr.mxu0 0.0
        %707 = vmatpush1.xpose.msra.mxu0 0.0
        %708 = vmatprep.subr.mxu0 0.0
        %709 = vmatpush1.xpose.msra.mxu0 0.0
        %710 = vmatprep.subr.mxu0 0.0
        %711 = vmatpush1.xpose.msra.mxu0 0.0
        %712 = vmatprep.subr.mxu0 0.0
        %713 = vmatpush1.xpose.msra.mxu0 0.0
        %714 = vmatprep.subr.mxu0 0.0
        %715 = vmatpush1.xpose.msra.mxu0 0.0
        %716 = vmatprep.subr.mxu0 0.0
        %717 = vmatpush1.xpose.msra.mxu0 0.0
        %718 = vmatprep.subr.mxu0 0.0
        %719 = vmatpush1.xpose.msra.mxu0 0.0
        %720 = vmatprep.subr.mxu0 0.0
        %721 = vmatpush1.xpose.msra.mxu0 0.0
        %722 = vmatprep.mubr.f32.mxu0 0.0
        %723 = vmatmul.mubr.f32.gmra.mrb[0].mxu0 %v653
        %v724 = vpop.f32.mrb[0].mxu0
        %v725 = vadd.f32 0.0, %v724
        %v726 = vpop.f32.mrb[0].mxu0
        %727 = vdwg.mxu0
        %v728 = vsel %vm651, %v725, -1e+30
        %vm729 = vcmask 64512
        %v730 = vsel %vm729, %v728, -inf
        %731 = vmax.xlane.f32.xlu0 %v730
        %v732 = vpop.xlane.xlu0 %731
        %v733 = vsub.f32 %v728, %v732
        %v734 = vmul.f32 %v733, 1.442695
        %v735 = vpow.pop %v734
        %v736 = vsel %vm729, %v735, 0.0
        %737 = vadd.xlane.f32.xlu0 %v736
        %v738 = vpop.xlane.xlu0 %737
        %v739 = vrcp.pop %v738
        %v740 = vmul.f32 %v735, %v739
        %v742 = vsel %vm729, %v740, 0
        %744 = vmatprep.subr.mxu0 0.0
        %745 = vmatpush1.msra.mxu0 %v622
        %746 = vmatprep.subr.mxu0 0.0
        %747 = vmatpush1.msra.mxu0 0.0
        %748 = vmatprep.subr.mxu0 0.0
        %749 = vmatpush1.msra.mxu0 0.0
        %750 = vmatprep.subr.mxu0 0.0
        %751 = vmatpush1.msra.mxu0 0.0
        %752 = vmatprep.subr.mxu0 0.0
        %753 = vmatpush1.msra.mxu0 0.0
        %754 = vmatprep.subr.mxu0 0.0
        %755 = vmatpush1.msra.mxu0 0.0
        %756 = vmatprep.subr.mxu0 0.0
        %757 = vmatpush1.msra.mxu0 0.0
        %758 = vmatprep.subr.mxu0 0.0
        %759 = vmatpush1.msra.mxu0 0.0
        %760 = vmatprep.subr.mxu0 0.0
        %761 = vmatpush1.msra.mxu0 0.0
        %762 = vmatprep.subr.mxu0 0.0
        %763 = vmatpush1.msra.mxu0 0.0
        %764 = vmatprep.subr.mxu0 0.0
        %765 = vmatpush1.msra.mxu0 0.0
        %766 = vmatprep.subr.mxu0 0.0
        %767 = vmatpush1.msra.mxu0 0.0
        %768 = vmatprep.subr.mxu0 0.0
        %769 = vmatpush1.msra.mxu0 0.0
        %770 = vmatprep.subr.mxu0 0.0
        %771 = vmatpush1.msra.mxu0 0.0
        %772 = vmatprep.subr.mxu0 0.0
        %773 = vmatpush1.msra.mxu0 0.0
        %774 = vmatprep.subr.mxu0 0.0
        %775 = vmatpush1.msra.mxu0 0.0
        %776 = vmatprep.subr.mxu0 0.0
        %777 = vmatpush1.msra.mxu0 0.0
        %778 = vmatprep.subr.mxu0 0.0
        %779 = vmatpush1.msra.mxu0 0.0
        %780 = vmatprep.subr.mxu0 0.0
        %781 = vmatpush1.msra.mxu0 0.0
        %782 = vmatprep.subr.mxu0 0.0
        %783 = vmatpush1.msra.mxu0 0.0
        %784 = vmatprep.subr.mxu0 0.0
        %785 = vmatpush1.msra.mxu0 0.0
        %786 = vmatprep.subr.mxu0 0.0
        %787 = vmatpush1.msra.mxu0 0.0
        %788 = vmatprep.subr.mxu0 0.0
        %789 = vmatpush1.msra.mxu0 0.0
        %790 = vmatprep.subr.mxu0 0.0
        %791 = vmatpush1.msra.mxu0 0.0
        %792 = vmatprep.subr.mxu0 0.0
        %793 = vmatpush1.msra.mxu0 0.0
        %794 = vmatprep.subr.mxu0 0.0
        %795 = vmatpush1.msra.mxu0 0.0
        %796 = vmatprep.subr.mxu0 0.0
        %797 = vmatpush1.msra.mxu0 0.0
        %798 = vmatprep.subr.mxu0 0.0
        %799 = vmatpush1.msra.mxu0 0.0
        %800 = vmatprep.subr.mxu0 0.0
        %801 = vmatpush1.msra.mxu0 0.0
        %802 = vmatprep.subr.mxu0 0.0
        %803 = vmatpush1.msra.mxu0 0.0
        %804 = vmatprep.subr.mxu0 0.0
        %805 = vmatpush1.msra.mxu0 0.0
        %806 = vmatprep.subr.mxu0 0.0
        %807 = vmatpush1.msra.mxu0 0.0
        %808 = vmatprep.mubr.f32.mxu0 0.0
        %809 = vmatmul.mubr.f32.gmra.mrb[0].mxu0 %v742
        %v810 = vpop.f32.mrb[0].mxu0
        %v811 = vadd.f32 0.0, %v810
        %v812 = vpop.f32.mrb[0].mxu0
        %813 = vdwg.mxu0
        %814 = vrot.lane.b32.xlu0 %v639, 96
        %v815 = vpop.permute.xlu0 %814
        %816 = vrot.lane.b32.xlu0 %v646, 96
        %v817 = vpop.permute.xlu0 %816
        %v818 = vsel %vm486, %v815, 0
        %v820 = vsel %vm486, %v817, 0
        %822 = vmatprep.subr.mxu0 0.0
        %823 = vmatpush1.xpose.msra.mxu0 %v820
        %824 = vmatprep.subr.mxu0 0.0
        %825 = vmatpush1.xpose.msra.mxu0 0.0
        %826 = vmatprep.subr.mxu0 0.0
        %827 = vmatpush1.xpose.msra.mxu0 0.0
        %828 = vmatprep.subr.mxu0 0.0
        %829 = vmatpush1.xpose.msra.mxu0 0.0
        %830 = vmatprep.subr.mxu0 0.0
        %831 = vmatpush1.xpose.msra.mxu0 0.0
        %832 = vmatprep.subr.mxu0 0.0
        %833 = vmatpush1.xpose.msra.mxu0 0.0
        %834 = vmatprep.subr.mxu0 0.0
        %835 = vmatpush1.xpose.msra.mxu0 0.0
        %836 = vmatprep.subr.mxu0 0.0
        %837 = vmatpush1.xpose.msra.mxu0 0.0
        %838 = vmatprep.subr.mxu0 0.0
        %839 = vmatpush1.xpose.msra.mxu0 0.0
        %840 = vmatprep.subr.mxu0 0.0
        %841 = vmatpush1.xpose.msra.mxu0 0.0
        %842 = vmatprep.subr.mxu0 0.0
        %843 = vmatpush1.xpose.msra.mxu0 0.0
        %844 = vmatprep.subr.mxu0 0.0
        %845 = vmatpush1.xpose.msra.mxu0 0.0
        %846 = vmatprep.subr.mxu0 0.0
        %847 = vmatpush1.xpose.msra.mxu0 0.0
        %848 = vmatprep.subr.mxu0 0.0
        %849 = vmatpush1.xpose.msra.mxu0 0.0
        %850 = vmatprep.subr.mxu0 0.0
        %851 = vmatpush1.xpose.msra.mxu0 0.0
        %852 = vmatprep.subr.mxu0 0.0
        %853 = vmatpush1.xpose.msra.mxu0 0.0
        %854 = vmatprep.subr.mxu0 0.0
        %855 = vmatpush1.xpose.msra.mxu0 0.0
        %856 = vmatprep.subr.mxu0 0.0
        %857 = vmatpush1.xpose.msra.mxu0 0.0
        %858 = vmatprep.subr.mxu0 0.0
        %859 = vmatpush1.xpose.msra.mxu0 0.0
        %860 = vmatprep.subr.mxu0 0.0
        %861 = vmatpush1.xpose.msra.mxu0 0.0
        %862 = vmatprep.subr.mxu0 0.0
        %863 = vmatpush1.xpose.msra.mxu0 0.0
        %864 = vmatprep.subr.mxu0 0.0
        %865 = vmatpush1.xpose.msra.mxu0 0.0
        %866 = vmatprep.subr.mxu0 0.0
        %867 = vmatpush1.xpose.msra.mxu0 0.0
        %868 = vmatprep.subr.mxu0 0.0
        %869 = vmatpush1.xpose.msra.mxu0 0.0
        %870 = vmatprep.subr.mxu0 0.0
        %871 = vmatpush1.xpose.msra.mxu0 0.0
        %872 = vmatprep.subr.mxu0 0.0
        %873 = vmatpush1.xpose.msra.mxu0 0.0
        %874 = vmatprep.subr.mxu0 0.0
        %875 = vmatpush1.xpose.msra.mxu0 0.0
        %876 = vmatprep.subr.mxu0 0.0
        %877 = vmatpush1.xpose.msra.mxu0 0.0
        %878 = vmatprep.subr.mxu0 0.0
        %879 = vmatpush1.xpose.msra.mxu0 0.0
        %880 = vmatprep.subr.mxu0 0.0
        %881 = vmatpush1.xpose.msra.mxu0 0.0
        %882 = vmatprep.subr.mxu0 0.0
        %883 = vmatpush1.xpose.msra.mxu0 0.0
        %884 = vmatprep.subr.mxu0 0.0
        %885 = vmatpush1.xpose.msra.mxu0 0.0
        %886 = vmatprep.mubr.f32.mxu0 0.0
        %887 = vmatmul.mubr.f32.gmra.mrb[0].mxu0 %v818
        %v888 = vpop.f32.mrb[0].mxu0
        %v889 = vadd.f32 0.0, %v888
        %v890 = vpop.f32.mrb[0].mxu0
        %891 = vdwg.mxu0
        %v892 = vsel %vm651, %v889, -1e+30
        %v893 = vsel %vm729, %v892, -inf
        %894 = vmax.xlane.f32.xlu0 %v893
        %v895 = vpop.xlane.xlu0 %894
        %v896 = vsub.f32 %v892, %v895
        %v897 = vmul.f32 %v896, 1.442695
        %v898 = vpow.pop %v897
        %v899 = vsel %vm729, %v898, 0.0
        %900 = vadd.xlane.f32.xlu0 %v899
        %v901 = vpop.xlane.xlu0 %900
        %v902 = vrcp.pop %v901
        %v903 = vmul.f32 %v898, %v902
        %905 = vrot.lane.b32.xlu0 %v622, 96
        %v906 = vpop.permute.xlu0 %905
        %v909 = vsel %vm729, %v903, 0
        %911 = vmatprep.subr.mxu0 0.0
        %912 = vmatpush1.msra.mxu0 %v906
        %913 = vmatprep.subr.mxu0 0.0
        %914 = vmatpush1.msra.mxu0 0.0
        %915 = vmatprep.subr.mxu0 0.0
        %916 = vmatpush1.msra.mxu0 0.0
        %917 = vmatprep.subr.mxu0 0.0
        %918 = vmatpush1.msra.mxu0 0.0
        %919 = vmatprep.subr.mxu0 0.0
        %920 = vmatpush1.msra.mxu0 0.0
        %921 = vmatprep.subr.mxu0 0.0
        %922 = vmatpush1.msra.mxu0 0.0
        %923 = vmatprep.subr.mxu0 0.0
        %924 = vmatpush1.msra.mxu0 0.0
        %925 = vmatprep.subr.mxu0 0.0
        %926 = vmatpush1.msra.mxu0 0.0
        %927 = vmatprep.subr.mxu0 0.0
        %928 = vmatpush1.msra.mxu0 0.0
        %929 = vmatprep.subr.mxu0 0.0
        %930 = vmatpush1.msra.mxu0 0.0
        %931 = vmatprep.subr.mxu0 0.0
        %932 = vmatpush1.msra.mxu0 0.0
        %933 = vmatprep.subr.mxu0 0.0
        %934 = vmatpush1.msra.mxu0 0.0
        %935 = vmatprep.subr.mxu0 0.0
        %936 = vmatpush1.msra.mxu0 0.0
        %937 = vmatprep.subr.mxu0 0.0
        %938 = vmatpush1.msra.mxu0 0.0
        %939 = vmatprep.subr.mxu0 0.0
        %940 = vmatpush1.msra.mxu0 0.0
        %941 = vmatprep.subr.mxu0 0.0
        %942 = vmatpush1.msra.mxu0 0.0
        %943 = vmatprep.subr.mxu0 0.0
        %944 = vmatpush1.msra.mxu0 0.0
        %945 = vmatprep.subr.mxu0 0.0
        %946 = vmatpush1.msra.mxu0 0.0
        %947 = vmatprep.subr.mxu0 0.0
        %948 = vmatpush1.msra.mxu0 0.0
        %949 = vmatprep.subr.mxu0 0.0
        %950 = vmatpush1.msra.mxu0 0.0
        %951 = vmatprep.subr.mxu0 0.0
        %952 = vmatpush1.msra.mxu0 0.0
        %953 = vmatprep.subr.mxu0 0.0
        %954 = vmatpush1.msra.mxu0 0.0
        %955 = vmatprep.subr.mxu0 0.0
        %956 = vmatpush1.msra.mxu0 0.0
        %957 = vmatprep.subr.mxu0 0.0
        %958 = vmatpush1.msra.mxu0 0.0
        %959 = vmatprep.subr.mxu0 0.0
        %960 = vmatpush1.msra.mxu0 0.0
        %961 = vmatprep.subr.mxu0 0.0
        %962 = vmatpush1.msra.mxu0 0.0
        %963 = vmatprep.subr.mxu0 0.0
        %964 = vmatpush1.msra.mxu0 0.0
        %965 = vmatprep.subr.mxu0 0.0
        %966 = vmatpush1.msra.mxu0 0.0
        %967 = vmatprep.subr.mxu0 0.0
        %968 = vmatpush1.msra.mxu0 0.0
        %969 = vmatprep.subr.mxu0 0.0
        %970 = vmatpush1.msra.mxu0 0.0
        %971 = vmatprep.subr.mxu0 0.0
        %972 = vmatpush1.msra.mxu0 0.0
        %973 = vmatprep.subr.mxu0 0.0
        %974 = vmatpush1.msra.mxu0 0.0
        %975 = vmatprep.mubr.f32.mxu0 0.0
        %976 = vmatmul.mubr.f32.gmra.mrb[0].mxu0 %v909
        %v977 = vpop.f32.mrb[0].mxu0
        %v978 = vadd.f32 0.0, %v977
        %v979 = vpop.f32.mrb[0].mxu0
        %980 = vdwg.mxu0
        %982 = vrot.lane.b32.xlu0 %v978, 32
        %v983 = vpop.permute.xlu0 %982
        %v985 = vsel %vm486, %v811, %v983
        %v986 = vpack.c.bf16 %v985, %v985
        %v987 = vld [vmem:[%s5] sm:$0xf]
        %v988 = vld [vmem:[%s5 + $0x4] sm:$0xf]
        %v989 = vld [vmem:[%s5 + $0x8] sm:$0xf]
        %v990 = vld [vmem:[%s5 + $0xc] sm:$0xf]
        %v991 = vld [vmem:[%s5 + $0x10] sm:$0xf]
        %v992 = vld [vmem:[%s5 + $0x14] sm:$0xf]
        %v993 = vld [vmem:[%s5 + $0x18] sm:$0xf]
        %v994 = vld [vmem:[%s5 + $0x1c] sm:$0xf]
        %v995 = vld [vmem:[%s6] sm:$0x1]
        %v997 = vlaneseq
        %v998 = vshrl.u32 %v997, 7
        %v999 = vsub.s32 0, %v998
        %v1000 = vrot.slane %v995, %v999
        %v1010 = vunpack.c.l.b16 %v987
        %v1011 = vunpack.c.l.b16 %v988
        %v1012 = vunpack.c.l.b16 %v989
        %v1013 = vunpack.c.l.b16 %v990
        %v1014 = vunpack.c.l.b16 %v991
        %v1015 = vunpack.c.l.b16 %v992
        %v1016 = vunpack.c.l.b16 %v993
        %v1017 = vunpack.c.l.b16 %v994
        %v1018 = vpack.c.b16 %v1011, %v1010
        %v1019 = vpack.c.b16 %v1013, %v1012
        %v1020 = vpack.c.b16 %v1015, %v1014
        %v1021 = vpack.c.b16 %v1017, %v1016
        %vm1026 = vcmask 523264
        %v1028 = vsel %vm1026, %v986, 0
        %1030 = vmatprep.subr.bf16.mxu0 0
        %1031 = vmatpush1.bf16.msra.mxu0 %v1018
        %1032 = vmatprep.subr.bf16.mxu0 0
        %1033 = vmatpush1.bf16.msra.mxu0 %v1019
        %1034 = vmatprep.subr.bf16.mxu0 0
        %1035 = vmatpush1.bf16.msra.mxu0 %v1020
        %1036 = vmatprep.subr.bf16.mxu0 0
        %1037 = vmatpush1.bf16.msra.mxu0 %v1021
        %1038 = vmatprep.subr.bf16.mxu0 0
        %1039 = vmatpush1.bf16.msra.mxu0 0
        %1040 = vmatprep.subr.bf16.mxu0 0
        %1041 = vmatpush1.bf16.msra.mxu0 0
        %1042 = vmatprep.subr.bf16.mxu0 0
        %1043 = vmatpush1.bf16.msra.mxu0 0
        %1044 = vmatprep.subr.bf16.mxu0 0
        %1045 = vmatpush1.bf16.msra.mxu0 0
        %1046 = vmatprep.subr.bf16.mxu0 0
        %1047 = vmatpush1.bf16.msra.mxu0 0
        %1048 = vmatprep.subr.bf16.mxu0 0
        %1049 = vmatpush1.bf16.msra.mxu0 0
        %1050 = vmatprep.subr.bf16.mxu0 0
        %1051 = vmatpush1.bf16.msra.mxu0 0
        %1052 = vmatprep.subr.bf16.mxu0 0
        %1053 = vmatpush1.bf16.msra.mxu0 0
        %1054 = vmatprep.subr.bf16.mxu0 0
        %1055 = vmatpush1.bf16.msra.mxu0 0
        %1056 = vmatprep.subr.bf16.mxu0 0
        %1057 = vmatpush1.bf16.msra.mxu0 0
        %1058 = vmatprep.subr.bf16.mxu0 0
        %1059 = vmatpush1.bf16.msra.mxu0 0
        %1060 = vmatprep.subr.bf16.mxu0 0
        %1061 = vmatpush1.bf16.msra.mxu0 0
        %1062 = vmatprep.mubr.bf16.mxu0 0
        %1063 = vmatmul.mubr.bf16.gmra.mrb[0].mxu0 %v1028
        %v1064 = vpop.f32.mrb[0].mxu0
        %v1065 = vadd.f32 %v1000, %v1064
        %v1066 = vpop.f32.mrb[0].mxu0
        %v1067 = vpop.f32.mrb[0].mxu0
        %v1068 = vpop.f32.mrb[0].mxu0
        %1069 = vdwg.mxu0
        %v1070 = vadd.f32 %v501, %v1065
        %v1071 = vmul.f32 %v1070, %v1070
        %v1072 = vsel %vm486, %v1071, 0.0
        %1073 = vadd.xlane.f32.xlu0 %v1072
        %v1074 = vpop.xlane.xlu0 %1073
        %v1075 = vrot.slane %v1074, 4
        %v1076 = vadd.f32 %v1074, %v1075
        %v1077 = vrot.slane %v1076, 2
        %v1078 = vadd.f32 %v1076, %v1077
        %v1079 = vrot.slane %v1078, 1
        %v1080 = vadd.f32 %v1078, %v1079
        %s1081 = vtos %v1080
        %v1082 = vstv %s1081
        %v1083 = vrsqrt.pop %v1082
        %v1084 = vmul.f32 %v1083, 16.0
        %v1085 = vmul.f32 %v1070, %v1084
        %v1086 = vmul.f32 %v483, %v1085
        %v1087 = vpack.c.bf16 %v1086, %v1086
        %v1088 = vld [vmem:[#allocation11] sm:$0xf]
        %v1089 = vld [vmem:[#allocation11 + $0x4] sm:$0xf]
        %v1090 = vld [vmem:[#allocation11 + $0x8] sm:$0xf]
        %v1091 = vld [vmem:[#allocation11 + $0xc] sm:$0xf]
        %v1092 = vld [vmem:[%s8] sm:$0x1]
        %v1094 = vlaneseq
        %v1095 = vshrl.u32 %v1094, 7
        %v1096 = vsub.s32 0, %v1095
        %v1097 = vrot.slane %v1092, %v1096
        %v1103 = vunpack.c.l.b16 %v1088
        %v1104 = vunpack.c.l.b16 %v1089
        %v1105 = vunpack.c.l.b16 %v1090
        %v1106 = vunpack.c.l.b16 %v1091
        %v1107 = vpack.c.b16 %v1104, %v1103
        %v1108 = vpack.c.b16 %v1106, %v1105
        %v1112 = vsel %vm486, %v1087, 0
        %1114 = vmatprep.subr.bf16.mxu0 0
        %1115 = vmatpush1.bf16.msra.mxu0 %v1107
        %1116 = vmatprep.subr.bf16.mxu0 0
        %1117 = vmatpush1.bf16.msra.mxu0 %v1108
        %1118 = vmatprep.subr.bf16.mxu0 0
        %1119 = vmatpush1.bf16.msra.mxu0 0
        %1120 = vmatprep.subr.bf16.mxu0 0
        %1121 = vmatpush1.bf16.msra.mxu0 0
        %1122 = vmatprep.subr.bf16.mxu0 0
        %1123 = vmatpush1.bf16.msra.mxu0 0
        %1124 = vmatprep.subr.bf16.mxu0 0
        %1125 = vmatpush1.bf16.msra.mxu0 0
        %1126 = vmatprep.subr.bf16.mxu0 0
        %1127 = vmatpush1.bf16.msra.mxu0 0
        %1128 = vmatprep.subr.bf16.mxu0 0
        %1129 = vmatpush1.bf16.msra.mxu0 0
        %1130 = vmatprep.subr.bf16.mxu0 0
        %1131 = vmatpush1.bf16.msra.mxu0 0
        %1132 = vmatprep.subr.bf16.mxu0 0
        %1133 = vmatpush1.bf16.msra.mxu0 0
        %1134 = vmatprep.subr.bf16.mxu0 0
        %1135 = vmatpush1.bf16.msra.mxu0 0
        %1136 = vmatprep.subr.bf16.mxu0 0
        %1137 = vmatpush1.bf16.msra.mxu0 0
        %1138 = vmatprep.subr.bf16.mxu0 0
        %1139 = vmatpush1.bf16.msra.mxu0 0
        %1140 = vmatprep.subr.bf16.mxu0 0
        %1141 = vmatpush1.bf16.msra.mxu0 0
        %1142 = vmatprep.subr.bf16.mxu0 0
        %1143 = vmatpush1.bf16.msra.mxu0 0
        %1144 = vmatprep.subr.bf16.mxu0 0
        %1145 = vmatpush1.bf16.msra.mxu0 0
        %1146 = vmatprep.mubr.bf16.mxu0 0
        %1147 = vmatmul.mubr.bf16.gmra.mrb[0].mxu0 %v1112
        %v1148 = vpop.f32.mrb[0].mxu0
        %v1149 = vadd.f32 %v1097, %v1148
        %v1150 = vpop.f32.mrb[0].mxu0
        %v1151 = vpop.f32.mrb[0].mxu0
        %v1152 = vpop.f32.mrb[0].mxu0
        %1153 = vdwg.mxu0
        %v1154 = vpack.c.bf16 %v1149, %v1149
        %v1155 = vld [vmem:[%s9] sm:$0xf]
        %v1156 = vld [vmem:[%s9 + $0x4] sm:$0xf]
        %v1157 = vld [vmem:[%s9 + $0x8] sm:$0xf]
        %v1158 = vld [vmem:[%s9 + $0xc] sm:$0xf]
        %v1159 = vld [vmem:[%s10] sm:$0x1]
        %v1161 = vlaneseq
        %v1162 = vshrl.u32 %v1161, 7
        %v1163 = vsub.s32 0, %v1162
        %v1164 = vrot.slane %v1159, %v1163
        %v1170 = vunpack.c.l.b16 %v1155
        %v1171 = vunpack.c.l.b16 %v1156
        %v1172 = vunpack.c.l.b16 %v1157
        %v1173 = vunpack.c.l.b16 %v1158
        %v1174 = vpack.c.b16 %v1171, %v1170
        %v1175 = vpack.c.b16 %v1173, %v1172
        %v1179 = vsel %vm486, %v1154, 0
        %1181 = vmatprep.subr.bf16.mxu0 0
        %1182 = vmatpush1.bf16.msra.mxu0 %v1174
        %1183 = vmatprep.subr.bf16.mxu0 0
        %1184 = vmatpush1.bf16.msra.mxu0 %v1175
        %1185 = vmatprep.subr.bf16.mxu0 0
        %1186 = vmatpush1.bf16.msra.mxu0 0
        %1187 = vmatprep.subr.bf16.mxu0 0
        %1188 = vmatpush1.bf16.msra.mxu0 0
        %1189 = vmatprep.subr.bf16.mxu0 0
        %1190 = vmatpush1.bf16.msra.mxu0 0
        %1191 = vmatprep.subr.bf16.mxu0 0
        %1192 = vmatpush1.bf16.msra.mxu0 0
        %1193 = vmatprep.subr.bf16.mxu0 0
        %1194 = vmatpush1.bf16.msra.mxu0 0
        %1195 = vmatprep.subr.bf16.mxu0 0
        %1196 = vmatpush1.bf16.msra.mxu0 0
        %1197 = vmatprep.subr.bf16.mxu0 0
        %1198 = vmatpush1.bf16.msra.mxu0 0
        %1199 = vmatprep.subr.bf16.mxu0 0
        %1200 = vmatpush1.bf16.msra.mxu0 0
        %1201 = vmatprep.subr.bf16.mxu0 0
        %1202 = vmatpush1.bf16.msra.mxu0 0
        %1203 = vmatprep.subr.bf16.mxu0 0
        %1204 = vmatpush1.bf16.msra.mxu0 0
        %1205 = vmatprep.subr.bf16.mxu0 0
        %1206 = vmatpush1.bf16.msra.mxu0 0
        %1207 = vmatprep.subr.bf16.mxu0 0
        %1208 = vmatpush1.bf16.msra.mxu0 0
        %1209 = vmatprep.subr.bf16.mxu0 0
        %1210 = vmatpush1.bf16.msra.mxu0 0
        %1211 = vmatprep.subr.bf16.mxu0 0
        %1212 = vmatpush1.bf16.msra.mxu0 0
        %1213 = vmatprep.mubr.bf16.mxu0 0
        %1214 = vmatmul.mubr.bf16.gmra.mrb[0].mxu0 %v1179
        %v1215 = vpop.f32.mrb[0].mxu0
        %v1216 = vadd.f32 %v1164, %v1215
        %v1217 = vpop.f32.mrb[0].mxu0
        %v1218 = vpop.f32.mrb[0].mxu0
        %v1219 = vpop.f32.mrb[0].mxu0
        %1220 = vdwg.mxu0
        %s1221 = sld [smem:[#allocation2]]
        %v1222 = vstv %s1221
        %v1223 = vmul.f32 %v1222, %v1216
        %v1224 = vxor.u32 %v1223, 2147483648
        %v1225 = vmul.f32 %v1224, 1.442695
        %v1226 = vpow.pop %v1225
        %v1227 = vadd.f32 %v1226, 1.0
        %v1228 = vrcp.pop %v1227
        %v1229 = vmul.f32 1.0, %v1228
        %v1230 = vmul.f32 %v1216, %v1229
        %1232 = vrot.lane.b32.xlu0 %v1216, 96
        %v1233 = vpop.permute.xlu0 %1232
        %v1235 = vmul.f32 %v1230, %v1233
        %v1236 = vadd.f32 %v1086, %v1235
        %1237 = vst.msk [vmem:[%s481] sm:$0xff] %vm486, %v1236
        %s1238 = sand.u32 %s297, 1
        %s1239 = scalar_lea.sflag [#allocation5], %s1238
        %s1240 = sand.u32 %s297, 1
        %s1241 = smul.addr %s1240, 8
        %s1242 = scalar_lea.vmem [#allocation12], %s1241
        // Predicated region
        $region89: #{tpu_custom_call.1} parent=67 // pred_check
          %p1243 = pneg %p307
        $region90: #{tpu_custom_call.1} parent=67 // pred_check_branch
          %1245 = sbr.rel (%p1243) target = $region92
        $region91: #{tpu_custom_call.1} parent=67 // pred_region
          %s1247 = ssub.s32 128, 128
          %1248 = vsyncadd %s1239, %s1247
          %s1249 = smul.addr %s32, 128
          %s1250 = scalar_lea.hbm %s12, %s1249
          %s1252 = sshll.u32 %s1242, 4
          %s1253 = int_to_ptr.vmem [resolvable:$true] %s1252
          %1255 = dma.vmem_to_hbm [thread:$0]  %s1253, 128, %s1250, %s1239
        $region92: #{tpu_custom_call.1} parent=67 // pred_fallthru
          _
      $region68: #{tpu_custom_call.1} parent=5 // pred_fallthru
        _
      %p1256 = scmp.le.s32.totalorder 2, %s27
      // Predicated region
      $region93: #{tpu_custom_call.1} parent=5 // pred_check
        %p1257 = pneg %p1256
      $region94: #{tpu_custom_call.1} parent=5 // pred_check_branch
        %1259 = sbr.rel (%p1257) target = $region96
      $region95: #{tpu_custom_call.1} parent=5 // pred_region
        %s1260 = ssub.s32 %s27, 2
        // Predicated region
        $region97: #{tpu_custom_call.1} parent=95 // pred_check
          %p1261 = pneg %p313
        $region98: #{tpu_custom_call.1} parent=95 // pred_check_branch
          %1263 = sbr.rel (%p1261) target = $region100
        $region99: #{tpu_custom_call.1} parent=95 // pred_region
          %s1264 = sand.u32 %s298, 1
          %s1265 = scalar_lea.sflag [#allocation5], %s1264
          %s1266 = sand.u32 %s298, 1
          %s1267 = smul.addr %s1266, 8
          %s1268 = scalar_lea.vmem [#allocation12], %s1267
          %1269 = dma.done %s1265, 128
        $region100: #{tpu_custom_call.1} parent=95 // pred_fallthru
          _
      $region96: #{tpu_custom_call.1} parent=5 // pred_fallthru
        _
    $region6: #{tpu_custom_call.1} parent=1 // loop_footer
      %s31 = sadd.s32 1, %s27
    $region7: #{tpu_custom_call.1} parent=1 // loop_footer_branch
      %26 = sbr.rel target = $region3
    $region8: #{tpu_custom_call.1} parent=1 // loop_exit
      _
    %1270 = vsyncpa [#allocation4], 1
    %s1271 = scalar_lea.sflag [#allocation4], 1
    %1272 = vsyncpa %s1271, 1
    %1273 = vsyncpa [#allocation7], 1
    %1274 = vsyncpa [#allocation10], 1
    %1275 = vsyncpa [#allocation5], 1
    %s1276 = scalar_lea.sflag [#allocation5], 1
    %1277 = vsyncpa %s1276, 1

</llo_original>
